<compile_context>
chip_gen: v7x
topology: tpu7x:2x2x1
jax: 0.10.0
libtpu: 0.0.40
codegen_flags: <defaults>
</compile_context>

<pallas_src>
import functools
import jax
import jax.numpy as jnp
from jax.experimental import pallas as pl
from jax.experimental.pallas import tpu as pltpu

LN_EPS = 1e-5        # torch.nn.LayerNorm default
# NOTE: -1e30 (not -inf) so a hypothetical fully-masked tile cannot produce
# NaNs via (-inf) - (-inf); with the current padding every tile always has at
# least one valid key, so either choice is numerically safe here.
NEG_INF = -1e30


@functools.lru_cache(maxsize=None)
def _vmem_limit_bytes():
    # Generation-aware scoped-VMEM limit: ~75% of physical per-core VMEM
    # (~96 MiB on v5e/v6e's 128 MiB, ~48 MiB on v7x's 64 MiB), leaving headroom
    # for double-buffering + compiler scratch.  Conservative fallback: 48 MiB.
    cap = 64 * 1024 * 1024
    try:
        cap = int(pltpu.get_tpu_info().vmem_capacity_bytes)
    except Exception:
        pass
    return min(int(cap * 3 // 4), 100 * 1024 * 1024)


def _cparams(semantics):
    return pltpu.CompilerParams(dimension_semantics=semantics,
                                vmem_limit_bytes=_vmem_limit_bytes())


# ----------------------------------------------------------------------------
# in-kernel helpers
# ----------------------------------------------------------------------------
def _layernorm(x, gamma, beta):
    # x: (..., D) fp32, gamma/beta: (1, D) fp32
    mu = jnp.mean(x, axis=-1, keepdims=True)
    var = jnp.mean(jnp.square(x - mu), axis=-1, keepdims=True)
    return (x - mu) * jax.lax.rsqrt(var + LN_EPS) * gamma + beta


def _gelu_tanh(x):
    # tanh-form GELU (|err| < ~1e-3 vs exact erf GELU); tanh runs on the EUP.
    c = 0.7978845608028654  # sqrt(2/pi)
    return 0.5 * x * (1.0 + jnp.tanh(c * (x + 0.044715 * x * x * x)))


def _dot(a, b):
    # a @ b, bf16 operands, fp32 MXU accumulation
    return jnp.dot(a, b, preferred_element_type=jnp.float32)


def _dot_nt(a, b):
    # a @ b.T without materializing a transpose
    return jax.lax.dot_general(a, b, (((1,), (1,)), ((), ())),
                               preferred_element_type=jnp.float32)


# ----------------------------------------------------------------------------
# cross-attention kernel (flash-style online softmax over the context axis)
# ----------------------------------------------------------------------------
def cross_attn_kernel(x_ref, ctx_ref, gx_ref, bx_ref, gc_ref, bc_ref,
                      wq_ref, wk_ref, wv_ref, wo_ref, bo_ref, o_ref,
                      q_sc, m_sc, l_sc, acc_sc,
                      *, heads, dim_head, kv_len, kv_tile):
    kv_i = pl.program_id(1)
    last = pl.num_programs(1) - 1
    n_q, inner = acc_sc.shape

    @pl.when(kv_i == 0)
    def _():
        # Query path computed ONCE per batch row (reused for every kv tile);
        # softmax scale folded into q so sim needs no per-tile multiply.
        xn = _layernorm(x_ref[0], gx_ref[...], bx_ref[...]).astype(jnp.bfloat16)
        q = _dot(xn, wq_ref[...]) * (dim_head ** -0.5)          # (N, inner) f32
        q_sc[...] = q.astype(jnp.bfloat16)
        m_sc[...] = jnp.full(m_sc.shape, NEG_INF, jnp.float32)
        l_sc[...] = jnp.zeros(l_sc.shape, jnp.float32)
        acc_sc[...] = jnp.zeros(acc_sc.shape, jnp.float32)

    # Context tile streamed as bf16; LayerNorm statistics in fp32.
    cn = _layernorm(ctx_ref[0].astype(jnp.float32),
                    gc_ref[...], bc_ref[...]).astype(jnp.bfloat16)
    k = _dot(cn, wk_ref[...]).astype(jnp.bfloat16)              # (tM, inner)
    v = _dot(cn, wv_ref[...]).astype(jnp.bfloat16)              # (tM, inner)

    # Key-padding bias: only emitted at all when M is not a tile multiple;
    # it is all-zero except on the (single, last) padded tile.
    kbias = None
    if kv_len % kv_tile != 0:
        key_idx = kv_i * kv_tile + jax.lax.broadcasted_iota(
            jnp.int32, (1, kv_tile), 1)
        kbias = jnp.where(key_idx < kv_len, 0.0, NEG_INF)       # (1, tM)

    q = q_sc[...]                                               # (N, inner) bf16
    for h in range(heads):                                      # static unroll
        sl = slice(h * dim_head, (h + 1) * dim_head)
        sim = _dot_nt(q[:, sl], k[:, sl])                       # (N, tM) f32
        if kbias is not None:
            sim = sim + kbias

        m_prev = m_sc[h]                                        # (N, 128) lane-dense
        m_new = jnp.maximum(m_prev, jnp.max(sim, axis=-1, keepdims=True))
        alpha = jnp.exp(m_prev - m_new)
        p = jnp.exp(sim - m_new[:, :1])                         # (N, tM)
        l_sc[h] = alpha * l_sc[h] + jnp.sum(p, axis=-1, keepdims=True)
        acc_sc[:, sl] = (alpha[:, :1] * acc_sc[:, sl]
                         + _dot(p.astype(jnp.bfloat16), v[:, sl]))
        m_sc[h] = m_new

    @pl.when(kv_i == last)
    def _():
        inv_l = jnp.concatenate(
            [jnp.broadcast_to(pl.reciprocal(l_sc[h][:, :1], approx=True),
                              (n_q, dim_head)) for h in range(heads)], axis=-1)
        attn = (acc_sc[...] * inv_l).astype(jnp.bfloat16)       # (N, inner)
        # one wide (N, inner) @ (inner, D) output projection + residual + bias
        o_ref[0] = x_ref[0] + bo_ref[...] + _dot(attn, wo_ref[...])


# ----------------------------------------------------------------------------
# fused residual block: cross_ff -> Mixer -> latent_ff  (x stays in VMEM)
# ----------------------------------------------------------------------------
def _ff_delta(x, g, b, w1v, b1v, w1g, b1g, w2, b2):
    # PreNorm + Linear(D, 8D) as two halves (value, gate) + GEGLU + Linear(4D, D)
    xn = _layernorm(x, g, b).astype(jnp.bfloat16)
    v = _dot(xn, w1v) + b1v
    u = _dot(xn, w1g) + b1g
    y = (v * _gelu_tanh(u)).astype(jnp.bfloat16)
    return _dot(y, w2) + b2


def _mixer_delta(x, g, b, w1, b1, w2, b2):
    # PreNorm + Conv1d(N,4N,1) -> GELU -> Conv1d(4N,N,1) over the token axis
    xn = _layernorm(x, g, b).astype(jnp.bfloat16)
    h = _dot(w1, xn) + b1
    h = _gelu_tanh(h).astype(jnp.bfloat16)
    return _dot(w2, h) + b2


def latent_block_kernel(x_ref,
                        cg, cb, cw1v, cb1v, cw1g, cb1g, cw2, cb2,     # cross_ff
                        mg, mb, mw1, mb1, mw2, mb2,                   # mixer
                        lg, lb, lw1v, lb1v, lw1g, lb1g, lw2, lb2,     # latent_ff
                        o_ref):
    x = x_ref[0]                                                      # (N, D)
    x = x + _ff_delta(x, cg[...], cb[...], cw1v[...], cb1v[...],
                      cw1g[...], cb1g[...], cw2[...], cb2[...])
    x = x + _mixer_delta(x, mg[...], mb[...], mw1[...], mb1[...],
                         mw2[...], mb2[...])
    x = x + _ff_delta(x, lg[...], lb[...], lw1v[...], lb1v[...],
                      lw1g[...], lb1g[...], lw2[...], lb2[...])
    o_ref[0] = x


# ----------------------------------------------------------------------------
# logits head kernel: mean over latents + LayerNorm + Linear (lane-padded out)
# ----------------------------------------------------------------------------
def logits_kernel(x_ref, g_ref, b_ref, w_ref, bl_ref, o_ref):
    x = x_ref[0]                                          # (N, D)
    m = jnp.mean(x, axis=0, keepdims=True)                # (1, D)
    mn = _layernorm(m, g_ref[...], b_ref[...]).astype(jnp.bfloat16)
    o_ref[0] = _dot(mn, w_ref[...]) + bl_ref[...]


# ----------------------------------------------------------------------------
# pallas_call wrappers
# ----------------------------------------------------------------------------
def _winv_spec(shape, ngrid):
    # grid-invariant (weight) operand: same block for every grid step
    zeros = (0,) * len(shape)
    if ngrid == 1:
        return pl.BlockSpec(shape, lambda b, _z=zeros: _z)
    return pl.BlockSpec(shape, lambda b, j, _z=zeros: _z)


def cross_attention(x, ctx, p, *, heads, dim_head, kv_block=1024):
    B, N, D = x.shape
    _, M, C = ctx.shape
    inner = heads * dim_head

    tM = M if M <= kv_block else max(8, (kv_block // 8) * 8)
    n_kv = pl.cdiv(M, tM)
    M_pad = n_kv * tM
    if M_pad != M:
        ctx = jnp.pad(ctx, ((0, 0), (0, M_pad - M), (0, 0)))

    weights = (p["g_x"], p["b_x"], p["g_c"], p["b_c"],
               p["wq"], p["wk"], p["wv"], p["wo"], p["bo"])
    kernel = functools.partial(cross_attn_kernel, heads=heads,
                               dim_head=dim_head, kv_len=M, kv_tile=tM)
    # TODO(synk): add pipeline_mode=pl.Buffered(3) on the ctx spec if profiling
    # shows the ctx DMA exposed (per-tile compute too thin to hide it).
    return pl.pallas_call(
        kernel,
        out_shape=jax.ShapeDtypeStruct((B, N, D), jnp.float32),
        grid=(B, n_kv),
        in_specs=[pl.BlockSpec((1, N, D), lambda b, j: (b, 0, 0)),
                  pl.BlockSpec((1, tM, C), lambda b, j: (b, j, 0))]
                 + [_winv_spec(w.shape, 2) for w in weights],
        out_specs=pl.BlockSpec((1, N, D), lambda b, j: (b, 0, 0)),
        scratch_shapes=[pltpu.VMEM((N, inner), jnp.bfloat16),        # scaled q
                        pltpu.VMEM((heads, N, 128), jnp.float32),    # m (lane-dense)
                        pltpu.VMEM((heads, N, 128), jnp.float32),    # l (lane-dense)
                        pltpu.VMEM((N, inner), jnp.float32)],        # acc
        compiler_params=_cparams(("parallel", "arbitrary")),
    )(x, ctx, *weights)


def _ff_args(p):
    return (p["g"], p["b"], p["w1v"], p["b1v"], p["w1g"], p["b1g"],
            p["w2"], p["b2"])


def _mixer_args(p):
    return (p["g"], p["b"], p["w1"], p["b1"], p["w2"], p["b2"])


def latent_block(x, cross_ff_p, mixer_p, latent_ff_p):
    B, N, D = x.shape
    weights = _ff_args(cross_ff_p) + _mixer_args(mixer_p) + _ff_args(latent_ff_p)
    return pl.pallas_call(
        latent_block_kernel,
        out_shape=jax.ShapeDtypeStruct((B, N, D), jnp.float32),
        grid=(B,),
        in_specs=[pl.BlockSpec((1, N, D), lambda b: (b, 0, 0))]
                 + [_winv_spec(w.shape, 1) for w in weights],
        out_specs=pl.BlockSpec((1, N, D), lambda b: (b, 0, 0)),
        compiler_params=_cparams(("parallel",)),
    )(x, *weights)


def to_logits(x, p):
    B, N, D = x.shape
    nc_pad = p["w"].shape[-1]
    weights = (p["g"], p["b"], p["w"], p["bias"])
    out = pl.pallas_call(
        logits_kernel,
        out_shape=jax.ShapeDtypeStruct((B, 1, nc_pad), jnp.float32),
        grid=(B,),
        in_specs=[pl.BlockSpec((1, N, D), lambda b: (b, 0, 0))]
                 + [_winv_spec(w.shape, 1) for w in weights],
        out_specs=pl.BlockSpec((1, 1, nc_pad), lambda b: (b, 0, 0)),
        compiler_params=_cparams(("parallel",)),
    )(x, *weights)
    return out[:, 0, :p["nc"]]


# ----------------------------------------------------------------------------
# one-time weight preprocessing (bf16 casts / GEGLU split / logits padding)
# ----------------------------------------------------------------------------
def prepare_params(params):
    bf = lambda a: jnp.asarray(a, jnp.bfloat16)

    def prep_ff(p):
        # GEGLU column ordering must match the reference chunk(2, dim=-1):
        # first half = value, second half = gate.
        half = p["w1"].shape[-1] // 2
        return {"g": p["g"], "b": p["b"],
                "w1v": bf(p["w1"][:, :half]), "b1v": p["b1"][:, :half],
                "w1g": bf(p["w1"][:, half:]), "b1g": p["b1"][:, half:],
                "w2": bf(p["w2"]), "b2": p["b2"]}

    def prep_mixer(p):
        return {"g": p["g"], "b": p["b"], "w1": bf(p["w1"]), "b1": p["b1"],
                "w2": bf(p["w2"]), "b2": p["b2"]}

    def prep_cross(p):
        # head-fused layouts are the native (D, inner)/(C, inner)/(inner, D)
        return {"g_x": p["g_x"], "b_x": p["b_x"],
                "g_c": p["g_c"], "b_c": p["b_c"],
                "wq": bf(p["wq"]), "wk": bf(p["wk"]), "wv": bf(p["wv"]),
                "wo": bf(p["wo"]), "bo": p["bo"]}

    tl = params["to_logits"]
    nc = tl["w"].shape[-1]
    nc_pad = -(-nc // 128) * 128          # lane-dense logits store
    return {
        "latents": params["latents"],
        "to_logits": {"g": tl["g"], "b": tl["b"],
                      "w": bf(jnp.pad(tl["w"], ((0, 0), (0, nc_pad - nc)))),
                      "bias": jnp.pad(tl["bias"], ((0, 0), (0, nc_pad - nc))),
                      "nc": nc},
        "layers": [{"cross_attn": prep_cross(l["cross_attn"]),
                    "cross_ff": prep_ff(l["cross_ff"]),
                    "latent_attn": prep_mixer(l["latent_attn"]),
                    "latent_ff": prep_ff(l["latent_ff"])}
                   for l in params["layers"]],
    }


# ----------------------------------------------------------------------------
# pure-JAX reference blocks (fp32, exact) for the correctness check
# ----------------------------------------------------------------------------
def _layernorm_ref(x, g, b):
    mu = jnp.mean(x, axis=-1, keepdims=True)
    var = jnp.mean(jnp.square(x - mu), axis=-1, keepdims=True)
    return (x - mu) / jnp.sqrt(var + LN_EPS) * g + b


def cross_attention_ref(x, ctx, p, *, heads, dim_head, kv_block=None):
    del kv_block
    xn = _layernorm_ref(x, p["g_x"], p["b_x"])
    cn = _layernorm_ref(ctx, p["g_c"], p["b_c"])
    inner = heads * dim_head
    q = xn @ p["wq"]
    k = cn @ p["wk"]
    v = cn @ p["wv"]
    B, N, _ = q.shape
    M = k.shape[1]
    qh = q.reshape(B, N, heads, dim_head)
    kh = k.reshape(B, M, heads, dim_head)
    vh = v.reshape(B, M, heads, dim_head)
    sim = jnp.einsum("bihd,bjhd->bhij", qh, kh) * dim_head ** -0.5
    attn = jax.nn.softmax(sim, axis=-1)
    o = jnp.einsum("bhij,bjhd->bihd", attn, vh).reshape(B, N, inner)
    return o @ p["wo"] + p["bo"] + x


def feedforward_ref(x, p):
    xn = _layernorm_ref(x, p["g"], p["b"])
    h = xn @ p["w1"] + p["b1"]
    half = h.shape[-1] // 2
    y = h[..., :half] * jax.nn.gelu(h[..., half:], approximate=False)
    return y @ p["w2"] + p["b2"] + x


def mixer_ref(x, p):
    xn = _layernorm_ref(x, p["g"], p["b"])
    h = jnp.einsum("on,bnd->bod", p["w1"], xn) + p["b1"][None]
    h = jax.nn.gelu(h, approximate=False)
    o = jnp.einsum("no,bod->bnd", p["w2"], h) + p["b2"][None]
    return o + x


def latent_block_ref(x, cross_ff_p, mixer_p, latent_ff_p):
    x = feedforward_ref(x, cross_ff_p)
    x = mixer_ref(x, mixer_p)
    x = feedforward_ref(x, latent_ff_p)
    return x


def to_logits_ref(x, p):
    m = jnp.mean(x, axis=1)
    mn = _layernorm_ref(m, p["g"], p["b"])
    return mn @ p["w"] + p["bias"]


# ----------------------------------------------------------------------------
# glue: fourier positional encoding + full forward
# ----------------------------------------------------------------------------
def fourier_encode(x, max_freq, num_bands):
    x = x[..., None]
    scales = jnp.geomspace(1.0, max_freq / 2.0, num_bands).astype(jnp.float32)
    scales = scales.reshape((1,) * (x.ndim - 1) + (num_bands,))
    xs = x * scales * jnp.pi
    return jnp.concatenate([jnp.sin(xs), jnp.cos(xs), x], axis=-1)  # (..., 2nb+1)


def _forward(params, data, ops, *, max_freq, num_freq_bands, cross_heads,
             cross_dim_head, kv_block=1024, ctx_dtype=jnp.float32):
    cross_fn, block_fn, logits_fn = ops
    b = data.shape[0]
    axis = data.shape[1:-1]
    pos_axes = [jnp.linspace(-1.0, 1.0, s, dtype=jnp.float32) for s in axis]
    pos = jnp.stack(jnp.meshgrid(*pos_axes, indexing="ij"), axis=-1)
    enc = fourier_encode(pos, max_freq, num_freq_bands)
    enc = enc.reshape(axis + (-1,))
    enc = jnp.broadcast_to(enc[None], (b,) + enc.shape)
    d = jnp.concatenate([data, enc], axis=-1)
    d = d.reshape(b, -1, d.shape[-1]).astype(ctx_dtype)      # (b, M, input_dim)
    x = jnp.broadcast_to(params["latents"][None], (b,) + params["latents"].shape)
    x = jnp.asarray(x, jnp.float32)
    for layer in params["layers"]:
        x = cross_fn(x, d, layer["cross_attn"], heads=cross_heads,
                     dim_head=cross_dim_head, kv_block=kv_block)
        x = block_fn(x, layer["cross_ff"], layer["latent_attn"], layer["latent_ff"])
    return logits_fn(x, params["to_logits"])


def perceiver_forward(prepped_params, data, **kw):
    # context streamed bf16 into the cross-attention kernels
    return _forward(prepped_params, data, (cross_attention, latent_block, to_logits),
                    ctx_dtype=jnp.bfloat16, **kw)


def perceiver_forward_ref(raw_params, data, **kw):
    return _forward(raw_params, data,
                    (cross_attention_ref, latent_block_ref, to_logits_ref),
                    ctx_dtype=jnp.float32, **kw)


# ----------------------------------------------------------------------------
# deterministic parameter init (shapes per Perceiver.__init__)
# ----------------------------------------------------------------------------
def init_params(key, *, num_freq_bands, depth, input_channels, input_axis,
                num_latents, latent_dim, cross_heads, cross_dim_head, num_classes):
    D, N = latent_dim, num_latents
    C = input_axis * (num_freq_bands * 2 + 1) + input_channels
    inner = cross_heads * cross_dim_head

    def nrm(k, shape, scale=0.02):
        return scale * jax.random.normal(k, shape, jnp.float32)

    ones = lambda s: jnp.ones(s, jnp.float32)
    zeros = lambda s: jnp.zeros(s, jnp.float32)

    k_lat, k_log, *k_layers = jax.random.split(key, 2 + depth)
    klog = jax.random.split(k_log, 2)
    params = {
        "latents": jax.random.normal(k_lat, (N, D), jnp.float32),
        "to_logits": {"g": ones((1, D)), "b": zeros((1, D)),
                      "w": nrm(klog[0], (D, num_classes)),
                      "bias": nrm(klog[1], (1, num_classes))},
        "layers": [],
    }
    for kl in k_layers:
        ks = jax.random.split(kl, 17)
        cross_attn = {"g_x": ones((1, D)), "b_x": zeros((1, D)),
                      "g_c": ones((1, C)), "b_c": zeros((1, C)),
                      "wq": nrm(ks[0], (D, inner)),
                      "wk": nrm(ks[1], (C, inner)),
                      "wv": nrm(ks[2], (C, inner)),
                      "wo": nrm(ks[3], (inner, D)),
                      "bo": nrm(ks[4], (1, D))}
        cross_ff = {"g": ones((1, D)), "b": zeros((1, D)),
                    "w1": nrm(ks[5], (D, 8 * D)), "b1": nrm(ks[6], (1, 8 * D)),
                    "w2": nrm(ks[7], (4 * D, D)), "b2": nrm(ks[8], (1, D))}
        latent_attn = {"g": ones((1, D)), "b": zeros((1, D)),          # Mixer
                       "w1": nrm(ks[9], (4 * N, N)), "b1": nrm(ks[10], (4 * N, 1)),
                       "w2": nrm(ks[11], (N, 4 * N)), "b2": nrm(ks[12], (N, 1))}
        latent_ff = {"g": ones((1, D)), "b": zeros((1, D)),
                     "w1": nrm(ks[13], (D, 8 * D)), "b1": nrm(ks[14], (1, 8 * D)),
                     "w2": nrm(ks[15], (4 * D, D)), "b2": nrm(ks[16], (1, D))}
        params["layers"].append({"cross_attn": cross_attn, "cross_ff": cross_ff,
                                 "latent_attn": latent_attn, "latent_ff": latent_ff})
    return params


# ----------------------------------------------------------------------------
if __name__ == "__main__":
    cfg = dict(num_freq_bands=2, depth=2, input_channels=4, input_axis=2,
               num_latents=16, latent_dim=32, cross_heads=1, cross_dim_head=16,
               num_classes=10)
    max_freq = 4.0
    B, H, W = 2, 8, 10      # M = 80 context tokens (forces a padded last kv tile)

    key = jax.random.PRNGKey(0)
    pkey, dkey = jax.random.split(key)
    raw_params = init_params(pkey, **cfg)
    params = prepare_params(raw_params)       # one-time weight prep (bf16, splits)
    data = jax.random.normal(dkey, (B, H, W, cfg["input_channels"]), jnp.float32)

    kw = dict(max_freq=max_freq, num_freq_bands=cfg["num_freq_bands"],
              cross_heads=cfg["cross_heads"], cross_dim_head=cfg["cross_dim_head"],
              kv_block=32)  # small tile so the online-softmax path runs >1 step

    out = jax.block_until_ready(perceiver_forward(params, data, **kw))

    with jax.default_matmul_precision("highest"):   # true fp32 reference
        ref = perceiver_forward_ref(raw_params, data, **kw)

    assert out.shape == (B, cfg["num_classes"])
    err = float(jnp.max(jnp.abs(out - ref)))
    # tolerance covers bf16 ctx/MXU operands + tanh-GELU + approx reciprocal
    assert jnp.allclose(out, ref, atol=2e-2, rtol=2e-2), f"max abs diff {err}"
    print("KERNEL_OK")
</pallas_src>

<mosaic_0001>
module attributes {stable_mosaic.version = 11 : i64} {
  func.func @cross_attn_kernel(%arg0: i32, %arg1: i32, %arg2: memref<1x16x32xf32, #tpu.memory_space<vmem>>, %arg3: memref<1x32x14xbf16, #tpu.memory_space<vmem>>, %arg4: memref<1x32xf32, #tpu.memory_space<vmem>>, %arg5: memref<1x32xf32, #tpu.memory_space<vmem>>, %arg6: memref<1x14xf32, #tpu.memory_space<vmem>>, %arg7: memref<1x14xf32, #tpu.memory_space<vmem>>, %arg8: memref<32x16xbf16, #tpu.memory_space<vmem>>, %arg9: memref<14x16xbf16, #tpu.memory_space<vmem>>, %arg10: memref<14x16xbf16, #tpu.memory_space<vmem>>, %arg11: memref<16x32xbf16, #tpu.memory_space<vmem>>, %arg12: memref<1x32xf32, #tpu.memory_space<vmem>>, %arg13: memref<1x16x32xf32, #tpu.memory_space<vmem>>, %arg14: memref<16x16xbf16, #tpu.memory_space<vmem>>, %arg15: memref<1x16x128xf32, #tpu.memory_space<vmem>>, %arg16: memref<1x16x128xf32, #tpu.memory_space<vmem>>, %arg17: memref<16x16xf32, #tpu.memory_space<vmem>>) attributes {dimension_semantics = [#tpu.dimension_semantics<parallel>, #tpu.dimension_semantics<arbitrary>], iteration_bounds = array<i64: 2, 3>, scalar_prefetch = 0 : i64, scratch_operands = 4 : i64, tpu.core_type = #tpu.core_type<tc>, window_params = [{transform_indices = @transform_0, window_bounds = array<i64: 1, 16, 32>}, {transform_indices = @transform_1, window_bounds = array<i64: 1, 32, 14>}, {pipeline_mode = #tpu.pipeline_mode<synchronous>, transform_indices = @transform_2, window_bounds = array<i64: 1, 32>}, {pipeline_mode = #tpu.pipeline_mode<synchronous>, transform_indices = @transform_3, window_bounds = array<i64: 1, 32>}, {pipeline_mode = #tpu.pipeline_mode<synchronous>, transform_indices = @transform_4, window_bounds = array<i64: 1, 14>}, {pipeline_mode = #tpu.pipeline_mode<synchronous>, transform_indices = @transform_5, window_bounds = array<i64: 1, 14>}, {pipeline_mode = #tpu.pipeline_mode<synchronous>, transform_indices = @transform_6, window_bounds = array<i64: 32, 16>}, {pipeline_mode = #tpu.pipeline_mode<synchronous>, transform_indices = @transform_7, window_bounds = array<i64: 14, 16>}, {pipeline_mode = #tpu.pipeline_mode<synchronous>, transform_indices = @transform_8, window_bounds = array<i64: 14, 16>}, {pipeline_mode = #tpu.pipeline_mode<synchronous>, transform_indices = @transform_9, window_bounds = array<i64: 16, 32>}, {pipeline_mode = #tpu.pipeline_mode<synchronous>, transform_indices = @transform_10, window_bounds = array<i64: 1, 32>}, {transform_indices = @transform_11, window_bounds = array<i64: 1, 16, 32>}]} {
    %c0_i32 = arith.constant 0 : i32
    %0 = arith.cmpi eq, %arg1, %c0_i32 : i32
    %1 = arith.extui %0 : i1 to i32
    %c0_i32_0 = arith.constant 0 : i32
    %2 = arith.cmpi ne, %1, %c0_i32_0 : i32
    scf.if %2 {
      %c0_42 = arith.constant 0 : index
      %c0_43 = arith.constant 0 : index
      %c0_44 = arith.constant 0 : index
      %86 = vector.load %arg2[%c0_42, %c0_43, %c0_44] : memref<1x16x32xf32, #tpu.memory_space<vmem>>, vector<1x16x32xf32>
      %87 = vector.shape_cast %86 : vector<1x16x32xf32> to vector<16x32xf32>
      %c0_45 = arith.constant 0 : index
      %c0_46 = arith.constant 0 : index
      %88 = vector.load %arg4[%c0_45, %c0_46] : memref<1x32xf32, #tpu.memory_space<vmem>>, vector<1x32xf32>
      %c0_47 = arith.constant 0 : index
      %c0_48 = arith.constant 0 : index
      %89 = vector.load %arg5[%c0_47, %c0_48] : memref<1x32xf32, #tpu.memory_space<vmem>>, vector<1x32xf32>
      %cst_49 = arith.constant dense<0.000000e+00> : vector<16xf32>
      %90 = vector.multi_reduction <add>, %87, %cst_49 [1] : vector<16x32xf32> to vector<16xf32>
      %91 = vector.shape_cast %90 : vector<16xf32> to vector<16x1xf32>
      %cst_50 = arith.constant 3.200000e+01 : f32
      %92 = vector.broadcast %cst_50 : f32 to vector<16x1xf32>
      %93 = arith.divf %91, %92 : vector<16x1xf32>
      %94 = vector.broadcast %93 : vector<16x1xf32> to vector<16x32xf32>
      %95 = arith.subf %87, %94 : vector<16x32xf32>
      %96 = arith.mulf %95, %95 : vector<16x32xf32>
      %cst_51 = arith.constant dense<0.000000e+00> : vector<16xf32>
      %97 = vector.multi_reduction <add>, %96, %cst_51 [1] : vector<16x32xf32> to vector<16xf32>
      %98 = vector.shape_cast %97 : vector<16xf32> to vector<16x1xf32>
      %cst_52 = arith.constant 3.200000e+01 : f32
      %99 = vector.broadcast %cst_52 : f32 to vector<16x1xf32>
      %100 = arith.divf %98, %99 : vector<16x1xf32>
      %101 = vector.broadcast %93 : vector<16x1xf32> to vector<16x32xf32>
      %102 = arith.subf %87, %101 : vector<16x32xf32>
      %cst_53 = arith.constant 9.99999974E-6 : f32
      %103 = vector.broadcast %cst_53 : f32 to vector<16x1xf32>
      %104 = arith.addf %100, %103 : vector<16x1xf32>
      %105 = math.rsqrt %104 : vector<16x1xf32>
      %106 = vector.broadcast %105 : vector<16x1xf32> to vector<16x32xf32>
      %107 = arith.mulf %102, %106 : vector<16x32xf32>
      %108 = vector.broadcast %88 : vector<1x32xf32> to vector<16x32xf32>
      %109 = arith.mulf %107, %108 : vector<16x32xf32>
      %110 = vector.broadcast %89 : vector<1x32xf32> to vector<16x32xf32>
      %111 = arith.addf %109, %110 : vector<16x32xf32>
      %112 = arith.truncf %111 : vector<16x32xf32> to vector<16x32xbf16>
      %c0_54 = arith.constant 0 : index
      %c0_55 = arith.constant 0 : index
      %113 = vector.load %arg8[%c0_54, %c0_55] : memref<32x16xbf16, #tpu.memory_space<vmem>>, vector<32x16xbf16>
      %cst_56 = arith.constant dense<0.000000e+00> : vector<16x16xf32>
      %114 = tpu.matmul %112, %113, %cst_56 {dimension_numbers = #tpu.dot_dimension_numbers<[1], [0], [0], [1], [0, 0, 1, 1], [], []>} : vector<16x32xbf16>, vector<32x16xbf16>, vector<16x16xf32> -> vector<16x16xf32>
      %cst_57 = arith.constant 2.500000e-01 : f32
      %115 = vector.broadcast %cst_57 : f32 to vector<16x16xf32>
      %116 = arith.mulf %114, %115 : vector<16x16xf32>
      %117 = arith.truncf %116 : vector<16x16xf32> to vector<16x16xbf16>
      %c0_58 = arith.constant 0 : index
      %c0_59 = arith.constant 0 : index
      %118 = vector.load %arg14[%c0_58, %c0_59] : memref<16x16xbf16, #tpu.memory_space<vmem>>, vector<16x16xbf16>
      tpu.vector_store %arg14[%c0_58, %c0_59], %117 {strides = array<i32>} : memref<16x16xbf16, #tpu.memory_space<vmem>>, vector<16x16xbf16>,
      %cst_60 = arith.constant -1.000000e+30 : f32
      %119 = vector.broadcast %cst_60 : f32 to vector<1x16x128xf32>
      %c0_61 = arith.constant 0 : index
      %c0_62 = arith.constant 0 : index
      %c0_63 = arith.constant 0 : index
      %120 = vector.load %arg15[%c0_61, %c0_62, %c0_63] : memref<1x16x128xf32, #tpu.memory_space<vmem>>, vector<1x16x128xf32>
      tpu.vector_store %arg15[%c0_61, %c0_62, %c0_63], %119 {strides = array<i32>} : memref<1x16x128xf32, #tpu.memory_space<vmem>>, vector<1x16x128xf32>,
      %cst_64 = arith.constant 0.000000e+00 : f32
      %121 = vector.broadcast %cst_64 : f32 to vector<1x16x128xf32>
      %c0_65 = arith.constant 0 : index
      %c0_66 = arith.constant 0 : index
      %c0_67 = arith.constant 0 : index
      %122 = vector.load %arg16[%c0_65, %c0_66, %c0_67] : memref<1x16x128xf32, #tpu.memory_space<vmem>>, vector<1x16x128xf32>
      tpu.vector_store %arg16[%c0_65, %c0_66, %c0_67], %121 {strides = array<i32>} : memref<1x16x128xf32, #tpu.memory_space<vmem>>, vector<1x16x128xf32>,
      %cst_68 = arith.constant 0.000000e+00 : f32
      %123 = vector.broadcast %cst_68 : f32 to vector<16x16xf32>
      %c0_69 = arith.constant 0 : index
      %c0_70 = arith.constant 0 : index
      %124 = vector.load %arg17[%c0_69, %c0_70] : memref<16x16xf32, #tpu.memory_space<vmem>>, vector<16x16xf32>
      tpu.vector_store %arg17[%c0_69, %c0_70], %123 {strides = array<i32>} : memref<16x16xf32, #tpu.memory_space<vmem>>, vector<16x16xf32>,
    } else {
    }
    %c0 = arith.constant 0 : index
    %c0_1 = arith.constant 0 : index
    %c0_2 = arith.constant 0 : index
    %3 = vector.load %arg3[%c0, %c0_1, %c0_2] : memref<1x32x14xbf16, #tpu.memory_space<vmem>>, vector<1x32x14xbf16>
    %4 = vector.shape_cast %3 : vector<1x32x14xbf16> to vector<32x14xbf16>
    %5 = arith.extf %4 : vector<32x14xbf16> to vector<32x14xf32>
    %c0_3 = arith.constant 0 : index
    %c0_4 = arith.constant 0 : index
    %6 = vector.load %arg6[%c0_3, %c0_4] : memref<1x14xf32, #tpu.memory_space<vmem>>, vector<1x14xf32>
    %c0_5 = arith.constant 0 : index
    %c0_6 = arith.constant 0 : index
    %7 = vector.load %arg7[%c0_5, %c0_6] : memref<1x14xf32, #tpu.memory_space<vmem>>, vector<1x14xf32>
    %cst = arith.constant dense<0.000000e+00> : vector<32xf32>
    %8 = vector.multi_reduction <add>, %5, %cst [1] : vector<32x14xf32> to vector<32xf32>
    %9 = vector.shape_cast %8 : vector<32xf32> to vector<32x1xf32>
    %cst_7 = arith.constant 1.400000e+01 : f32
    %10 = vector.broadcast %cst_7 : f32 to vector<32x1xf32>
    %11 = arith.divf %9, %10 : vector<32x1xf32>
    %12 = vector.broadcast %11 : vector<32x1xf32> to vector<32x14xf32>
    %13 = arith.subf %5, %12 : vector<32x14xf32>
    %14 = arith.mulf %13, %13 : vector<32x14xf32>
    %cst_8 = arith.constant dense<0.000000e+00> : vector<32xf32>
    %15 = vector.multi_reduction <add>, %14, %cst_8 [1] : vector<32x14xf32> to vector<32xf32>
    %16 = vector.shape_cast %15 : vector<32xf32> to vector<32x1xf32>
    %cst_9 = arith.constant 1.400000e+01 : f32
    %17 = vector.broadcast %cst_9 : f32 to vector<32x1xf32>
    %18 = arith.divf %16, %17 : vector<32x1xf32>
    %19 = vector.broadcast %11 : vector<32x1xf32> to vector<32x14xf32>
    %20 = arith.subf %5, %19 : vector<32x14xf32>
    %cst_10 = arith.constant 9.99999974E-6 : f32
    %21 = vector.broadcast %cst_10 : f32 to vector<32x1xf32>
    %22 = arith.addf %18, %21 : vector<32x1xf32>
    %23 = math.rsqrt %22 : vector<32x1xf32>
    %24 = vector.broadcast %23 : vector<32x1xf32> to vector<32x14xf32>
    %25 = arith.mulf %20, %24 : vector<32x14xf32>
    %26 = vector.broadcast %6 : vector<1x14xf32> to vector<32x14xf32>
    %27 = arith.mulf %25, %26 : vector<32x14xf32>
    %28 = vector.broadcast %7 : vector<1x14xf32> to vector<32x14xf32>
    %29 = arith.addf %27, %28 : vector<32x14xf32>
    %30 = arith.truncf %29 : vector<32x14xf32> to vector<32x14xbf16>
    %c0_11 = arith.constant 0 : index
    %c0_12 = arith.constant 0 : index
    %31 = vector.load %arg9[%c0_11, %c0_12] : memref<14x16xbf16, #tpu.memory_space<vmem>>, vector<14x16xbf16>
    %cst_13 = arith.constant dense<0.000000e+00> : vector<32x16xf32>
    %32 = tpu.matmul %30, %31, %cst_13 {dimension_numbers = #tpu.dot_dimension_numbers<[1], [0], [0], [1], [0, 0, 1, 1], [], []>} : vector<32x14xbf16>, vector<14x16xbf16>, vector<32x16xf32> -> vector<32x16xf32>
    %33 = arith.truncf %32 : vector<32x16xf32> to vector<32x16xbf16>
    %c0_14 = arith.constant 0 : index
    %c0_15 = arith.constant 0 : index
    %34 = vector.load %arg10[%c0_14, %c0_15] : memref<14x16xbf16, #tpu.memory_space<vmem>>, vector<14x16xbf16>
    %cst_16 = arith.constant dense<0.000000e+00> : vector<32x16xf32>
    %35 = tpu.matmul %30, %34, %cst_16 {dimension_numbers = #tpu.dot_dimension_numbers<[1], [0], [0], [1], [0, 0, 1, 1], [], []>} : vector<32x14xbf16>, vector<14x16xbf16>, vector<32x16xf32> -> vector<32x16xf32>
    %36 = arith.truncf %35 : vector<32x16xf32> to vector<32x16xbf16>
    %c32_i32 = arith.constant 32 : i32
    %37 = arith.muli %arg1, %c32_i32 : i32
    %38 = tpu.iota {dimensions = array<i32: 1>} : vector<1x32xi32>
    %39 = vector.broadcast %37 : i32 to vector<1x32xi32>
    %40 = arith.addi %39, %38 : vector<1x32xi32>
    %c80_i32 = arith.constant 80 : i32
    %41 = vector.broadcast %c80_i32 : i32 to vector<1x32xi32>
    %42 = arith.cmpi slt, %40, %41 : vector<1x32xi32>
    %cst_17 = arith.constant 0.000000e+00 : f32
    %cst_18 = arith.constant -1.000000e+30 : f32
    %43 = vector.broadcast %cst_17 : f32 to vector<1x32xf32>
    %44 = vector.broadcast %cst_18 : f32 to vector<1x32xf32>
    %45 = arith.select %42, %43, %44 : vector<1x32xi1>, vector<1x32xf32>
    %c0_19 = arith.constant 0 : index
    %c0_20 = arith.constant 0 : index
    %46 = vector.load %arg14[%c0_19, %c0_20] : memref<16x16xbf16, #tpu.memory_space<vmem>>, vector<16x16xbf16>
    %cst_21 = arith.constant dense<0.000000e+00> : vector<16x32xf32>
    %47 = tpu.matmul %46, %33, %cst_21 {dimension_numbers = #tpu.dot_dimension_numbers<[1], [1], [0], [0], [0, 0, 1, 0], [], []>} : vector<16x16xbf16>, vector<32x16xbf16>, vector<16x32xf32> -> vector<16x32xf32>
    %48 = vector.broadcast %45 : vector<1x32xf32> to vector<16x32xf32>
    %49 = arith.addf %47, %48 : vector<16x32xf32>
    %c0_22 = arith.constant 0 : index
    %c0_23 = arith.constant 0 : index
    %c0_24 = arith.constant 0 : index
    %50 = vector.load %arg15[%c0_22, %c0_23, %c0_24] : memref<1x16x128xf32, #tpu.memory_space<vmem>>, vector<1x16x128xf32>
    %51 = vector.shape_cast %50 : vector<1x16x128xf32> to vector<16x128xf32>
    %cst_25 = arith.constant dense<0xFF800000> : vector<16xf32>
    %52 = vector.multi_reduction <maximumf>, %49, %cst_25 [1] : vector<16x32xf32> to vector<16xf32>
    %53 = vector.shape_cast %52 : vector<16xf32> to vector<16x1xf32>
    %54 = vector.broadcast %53 : vector<16x1xf32> to vector<16x128xf32>
    %55 = arith.maximumf %51, %54 : vector<16x128xf32>
    %56 = arith.subf %51, %55 : vector<16x128xf32>
    %57 = math.exp %56 : vector<16x128xf32>
    %58 = vector.extract_strided_slice %55 {offsets = [0, 0], sizes = [16, 1], strides = [1, 1]} : vector<16x128xf32> to vector<16x1xf32>
    %59 = vector.broadcast %58 : vector<16x1xf32> to vector<16x32xf32>
    %60 = arith.subf %49, %59 : vector<16x32xf32>
    %61 = math.exp %60 : vector<16x32xf32>
    %c0_26 = arith.constant 0 : index
    %c0_27 = arith.constant 0 : index
    %c0_28 = arith.constant 0 : index
    %62 = vector.load %arg16[%c0_26, %c0_27, %c0_28] : memref<1x16x128xf32, #tpu.memory_space<vmem>>, vector<1x16x128xf32>
    %63 = vector.shape_cast %62 : vector<1x16x128xf32> to vector<16x128xf32>
    %64 = arith.mulf %57, %63 : vector<16x128xf32>
    %cst_29 = arith.constant dense<0.000000e+00> : vector<16xf32>
    %65 = vector.multi_reduction <add>, %61, %cst_29 [1] : vector<16x32xf32> to vector<16xf32>
    %66 = vector.shape_cast %65 : vector<16xf32> to vector<16x1xf32>
    %67 = vector.broadcast %66 : vector<16x1xf32> to vector<16x128xf32>
    %68 = arith.addf %64, %67 : vector<16x128xf32>
    %c0_30 = arith.constant 0 : index
    %c0_31 = arith.constant 0 : index
    %c0_32 = arith.constant 0 : index
    %69 = vector.load %arg16[%c0_30, %c0_31, %c0_32] : memref<1x16x128xf32, #tpu.memory_space<vmem>>, vector<1x16x128xf32>
    %70 = vector.shape_cast %69 : vector<1x16x128xf32> to vector<16x128xf32>
    %71 = vector.shape_cast %68 : vector<16x128xf32> to vector<1x16x128xf32>
    tpu.vector_store %arg16[%c0_30, %c0_31, %c0_32], %71 {strides = array<i32>} : memref<1x16x128xf32, #tpu.memory_space<vmem>>, vector<1x16x128xf32>,
    %72 = vector.extract_strided_slice %57 {offsets = [0, 0], sizes = [16, 1], strides = [1, 1]} : vector<16x128xf32> to vector<16x1xf32>
    %c0_33 = arith.constant 0 : index
    %c0_34 = arith.constant 0 : index
    %73 = vector.load %arg17[%c0_33, %c0_34] : memref<16x16xf32, #tpu.memory_space<vmem>>, vector<16x16xf32>
    %74 = vector.broadcast %72 : vector<16x1xf32> to vector<16x16xf32>
    %75 = arith.mulf %74, %73 : vector<16x16xf32>
    %76 = arith.truncf %61 : vector<16x32xf32> to vector<16x32xbf16>
    %cst_35 = arith.constant dense<0.000000e+00> : vector<16x16xf32>
    %77 = tpu.matmul %76, %36, %cst_35 {dimension_numbers = #tpu.dot_dimension_numbers<[1], [0], [0], [1], [0, 0, 1, 1], [], []>} : vector<16x32xbf16>, vector<32x16xbf16>, vector<16x16xf32> -> vector<16x16xf32>
    %78 = arith.addf %75, %77 : vector<16x16xf32>
    %c0_36 = arith.constant 0 : index
    %c0_37 = arith.constant 0 : index
    %79 = vector.load %arg17[%c0_36, %c0_37] : memref<16x16xf32, #tpu.memory_space<vmem>>, vector<16x16xf32>
    tpu.vector_store %arg17[%c0_36, %c0_37], %78 {strides = array<i32>} : memref<16x16xf32, #tpu.memory_space<vmem>>, vector<16x16xf32>,
    %c0_38 = arith.constant 0 : index
    %c0_39 = arith.constant 0 : index
    %c0_40 = arith.constant 0 : index
    %80 = vector.load %arg15[%c0_38, %c0_39, %c0_40] : memref<1x16x128xf32, #tpu.memory_space<vmem>>, vector<1x16x128xf32>
    %81 = vector.shape_cast %80 : vector<1x16x128xf32> to vector<16x128xf32>
    %82 = vector.shape_cast %55 : vector<16x128xf32> to vector<1x16x128xf32>
    tpu.vector_store %arg15[%c0_38, %c0_39, %c0_40], %82 {strides = array<i32>} : memref<1x16x128xf32, #tpu.memory_space<vmem>>, vector<1x16x128xf32>,
    %c2_i32 = arith.constant 2 : i32
    %83 = arith.cmpi eq, %arg1, %c2_i32 : i32
    %84 = arith.extui %83 : i1 to i32
    %c0_i32_41 = arith.constant 0 : i32
    %85 = arith.cmpi ne, %84, %c0_i32_41 : i32
    scf.if %85 {
      %c0_42 = arith.constant 0 : index
      %c0_43 = arith.constant 0 : index
      %c0_44 = arith.constant 0 : index
      %86 = vector.load %arg16[%c0_42, %c0_43, %c0_44] : memref<1x16x128xf32, #tpu.memory_space<vmem>>, vector<1x16x128xf32>
      %87 = vector.shape_cast %86 : vector<1x16x128xf32> to vector<16x128xf32>
      %88 = vector.extract_strided_slice %87 {offsets = [0, 0], sizes = [16, 1], strides = [1, 1]} : vector<16x128xf32> to vector<16x1xf32>
      %89 = tpu.reciprocal %88 {approx = true} : vector<16x1xf32> -> vector<16x1xf32>
      %90 = vector.shape_cast %89 : vector<16x1xf32> to vector<16x1xf32>
      %91 = vector.broadcast %90 : vector<16x1xf32> to vector<16x16xf32>
      %c0_45 = arith.constant 0 : index
      %c0_46 = arith.constant 0 : index
      %92 = vector.load %arg17[%c0_45, %c0_46] : memref<16x16xf32, #tpu.memory_space<vmem>>, vector<16x16xf32>
      %93 = arith.mulf %92, %91 : vector<16x16xf32>
      %94 = arith.truncf %93 : vector<16x16xf32> to vector<16x16xbf16>
      %c0_47 = arith.constant 0 : index
      %c0_48 = arith.constant 0 : index
      %c0_49 = arith.constant 0 : index
      %95 = vector.load %arg2[%c0_47, %c0_48, %c0_49] : memref<1x16x32xf32, #tpu.memory_space<vmem>>, vector<1x16x32xf32>
      %96 = vector.shape_cast %95 : vector<1x16x32xf32> to vector<16x32xf32>
      %c0_50 = arith.constant 0 : index
      %c0_51 = arith.constant 0 : index
      %97 = vector.load %arg12[%c0_50, %c0_51] : memref<1x32xf32, #tpu.memory_space<vmem>>, vector<1x32xf32>
      %98 = vector.broadcast %97 : vector<1x32xf32> to vector<16x32xf32>
      %99 = arith.addf %96, %98 : vector<16x32xf32>
      %c0_52 = arith.constant 0 : index
      %c0_53 = arith.constant 0 : index
      %100 = vector.load %arg11[%c0_52, %c0_53] : memref<16x32xbf16, #tpu.memory_space<vmem>>, vector<16x32xbf16>
      %cst_54 = arith.constant dense<0.000000e+00> : vector<16x32xf32>
      %101 = tpu.matmul %94, %100, %cst_54 {dimension_numbers = #tpu.dot_dimension_numbers<[1], [0], [0], [1], [0, 0, 1, 1], [], []>} : vector<16x16xbf16>, vector<16x32xbf16>, vector<16x32xf32> -> vector<16x32xf32>
      %102 = arith.addf %99, %101 : vector<16x32xf32>
      %c0_55 = arith.constant 0 : index
      %c0_56 = arith.constant 0 : index
      %c0_57 = arith.constant 0 : index
      %103 = vector.load %arg13[%c0_55, %c0_56, %c0_57] : memref<1x16x32xf32, #tpu.memory_space<vmem>>, vector<1x16x32xf32>
      %104 = vector.shape_cast %103 : vector<1x16x32xf32> to vector<16x32xf32>
      %105 = vector.shape_cast %102 : vector<16x32xf32> to vector<1x16x32xf32>
      tpu.vector_store %arg13[%c0_55, %c0_56, %c0_57], %105 {strides = array<i32>} : memref<1x16x32xf32, #tpu.memory_space<vmem>>, vector<1x16x32xf32>,
    } else {
    }
    return
  }
  func.func @transform_0(%arg0: i32, %arg1: i32) -> (i32, i32, i32) {
    %c0_i32 = arith.constant 0 : i32
    %c0_i32_0 = arith.constant 0 : i32
    %c0_i32_1 = arith.constant 0 : i32
    return %arg0, %c0_i32, %c0_i32_0 : i32, i32, i32
  }
  func.func @transform_1(%arg0: i32, %arg1: i32) -> (i32, i32, i32) {
    %c0_i32 = arith.constant 0 : i32
    %c0_i32_0 = arith.constant 0 : i32
    return %arg0, %arg1, %c0_i32 : i32, i32, i32
  }
  func.func @transform_2(%arg0: i32, %arg1: i32) -> (i32, i32) {
    %c0_i32 = arith.constant 0 : i32
    %c0_i32_0 = arith.constant 0 : i32
    %c0_i32_1 = arith.constant 0 : i32
    return %c0_i32, %c0_i32_0 : i32, i32
  }
  func.func @transform_3(%arg0: i32, %arg1: i32) -> (i32, i32) {
    %c0_i32 = arith.constant 0 : i32
    %c0_i32_0 = arith.constant 0 : i32
    %c0_i32_1 = arith.constant 0 : i32
    return %c0_i32, %c0_i32_0 : i32, i32
  }
  func.func @transform_4(%arg0: i32, %arg1: i32) -> (i32, i32) {
    %c0_i32 = arith.constant 0 : i32
    %c0_i32_0 = arith.constant 0 : i32
    %c0_i32_1 = arith.constant 0 : i32
    return %c0_i32, %c0_i32_0 : i32, i32
  }
  func.func @transform_5(%arg0: i32, %arg1: i32) -> (i32, i32) {
    %c0_i32 = arith.constant 0 : i32
    %c0_i32_0 = arith.constant 0 : i32
    %c0_i32_1 = arith.constant 0 : i32
    return %c0_i32, %c0_i32_0 : i32, i32
  }
  func.func @transform_6(%arg0: i32, %arg1: i32) -> (i32, i32) {
    %c0_i32 = arith.constant 0 : i32
    %c0_i32_0 = arith.constant 0 : i32
    %c0_i32_1 = arith.constant 0 : i32
    return %c0_i32, %c0_i32_0 : i32, i32
  }
  func.func @transform_7(%arg0: i32, %arg1: i32) -> (i32, i32) {
    %c0_i32 = arith.constant 0 : i32
    %c0_i32_0 = arith.constant 0 : i32
    %c0_i32_1 = arith.constant 0 : i32
    return %c0_i32, %c0_i32_0 : i32, i32
  }
  func.func @transform_8(%arg0: i32, %arg1: i32) -> (i32, i32) {
    %c0_i32 = arith.constant 0 : i32
    %c0_i32_0 = arith.constant 0 : i32
    %c0_i32_1 = arith.constant 0 : i32
    return %c0_i32, %c0_i32_0 : i32, i32
  }
  func.func @transform_9(%arg0: i32, %arg1: i32) -> (i32, i32) {
    %c0_i32 = arith.constant 0 : i32
    %c0_i32_0 = arith.constant 0 : i32
    %c0_i32_1 = arith.constant 0 : i32
    return %c0_i32, %c0_i32_0 : i32, i32
  }
  func.func @transform_10(%arg0: i32, %arg1: i32) -> (i32, i32) {
    %c0_i32 = arith.constant 0 : i32
    %c0_i32_0 = arith.constant 0 : i32
    %c0_i32_1 = arith.constant 0 : i32
    return %c0_i32, %c0_i32_0 : i32, i32
  }
  func.func @transform_11(%arg0: i32, %arg1: i32) -> (i32, i32, i32) {
    %c0_i32 = arith.constant 0 : i32
    %c0_i32_0 = arith.constant 0 : i32
    %c0_i32_1 = arith.constant 0 : i32
    return %arg0, %c0_i32, %c0_i32_0 : i32, i32, i32
  }
}

</mosaic_0001>

<llo_original>
// kernel: tpu_custom_call.1
$region0: #{tpu_custom_call.1}
  #allocation0 [shape = 'u32[]', space=smem, size = 0x4, offset = 0x4, fixed_abs, tag = 'smem constant byte address 0x4 - core index']
  #allocation1 [shape = 'u32[144,128]{1,0:T(1,128)}', space=vmem, size = 0x12000, scoped, tag = 'internal scratch']
  #allocation2 [shape = 'bf16[16,16]{1,0:T(16,128)(2,1)}', space=vmem, size = 0x1000, scoped, tag = 'scratch operand']
  #allocation3 [shape = 'f32[1,16,128]{2,1,0:T(8,128)}', space=vmem, size = 0x2000, scoped, tag = 'scratch operand']
  #allocation4 [shape = 'f32[1,16,128]{2,1,0:T(8,128)}', space=vmem, size = 0x2000, scoped, tag = 'scratch operand']
  #allocation5 [shape = 'f32[16,16]{1,0:T(8,128)}', space=vmem, size = 0x2000, scoped, tag = 'scratch operand']
  %s0 = inlined_call_operand.vmem [shape: f32[2,16,32], index: 0, kind: input, shape index: {}]
  %s1 = inlined_call_operand.vmem [shape: bf16[2,96,14], index: 1, kind: input, shape index: {}]
  %s2 = inlined_call_operand.vmem [shape: f32[1,32], index: 2, kind: input, shape index: {}]
  %s3 = inlined_call_operand.vmem [shape: f32[1,32], index: 3, kind: input, shape index: {}]
  %s4 = inlined_call_operand.vmem [shape: f32[1,14], index: 4, kind: input, shape index: {}]
  %s5 = inlined_call_operand.vmem [shape: f32[1,14], index: 5, kind: input, shape index: {}]
  %s6 = inlined_call_operand.vmem [shape: bf16[32,16], index: 6, kind: input, shape index: {}]
  %s7 = inlined_call_operand.vmem [shape: bf16[14,16], index: 7, kind: input, shape index: {}]
  %s8 = inlined_call_operand.vmem [shape: bf16[14,16], index: 8, kind: input, shape index: {}]
  %s9 = inlined_call_operand.vmem [shape: bf16[16,32], index: 9, kind: input, shape index: {}]
  %s10 = inlined_call_operand.vmem [shape: f32[1,32], index: 10, kind: input, shape index: {}]
  %s11 = inlined_call_operand.hbm [shape: f32[2,16,32], index: 11, kind: output, shape index: {}]
  %s12 = sld [smem:[#allocation0]]
  $region85: #{tpu_custom_call.1} parent=0
    _
  %s14 = ssub.s32 1, %s12
  %s15 = scalar_select 0, %s14, %s12
  $region1: #{tpu_custom_call.1} parent=0
    #allocation6 [shape = 'u8[16384]{0}', space=vmem, size = 0x4000, scoped, tag = 'output window, operand 0']
    #allocation7 [shape = 's32[2]{0}', space=sflag, size = 0x8, scoped, tag = 'scoped memory for tpu_custom_call.1']
    %16 = vsyncpa [#allocation7], 0
    %s17 = scalar_lea.sflag [#allocation7], 1
    %18 = vsyncpa %s17, 0
    loop: start=0, step=1, limit=8
    $region2: #{tpu_custom_call.1} parent=1 // loop_pre_header
      _
    $region3: #{tpu_custom_call.1} parent=1 // loop_header
      %s20 = sphi 0, %s24
      %p21 = scmp.ge.s32.totalorder %s20, 8
      %s27 = sphi 0, %s39
      %s28 = sphi 0, %s35
      %s29 = sphi 0, %s27
      %s30 = sphi 0, %s28
      %s31 = sphi 0, %s29
      %s32 = sphi 0, %s30
      %s42 = sphi 0, %s44
      %s45 = sphi 0, %s42
      %s46 = sphi 0, %s45
      %s62 = sphi 0, %s46
      %s70 = sphi 0, %s72
      %s73 = sphi 0, %s70
      %s74 = sphi 0, %s73
      %s90 = sphi 0, %s74
      %s94 = sphi 0, %s94
      %s96 = sphi 0, %s94
      %s97 = sphi 0, %s96
      %s111 = sphi 0, %s97
      %s115 = sphi 0, %s115
      %s117 = sphi 0, %s115
      %s118 = sphi 0, %s117
      %s132 = sphi 0, %s118
      %s136 = sphi 0, %s136
      %s138 = sphi 0, %s136
      %s139 = sphi 0, %s138
      %s153 = sphi 0, %s139
      %s157 = sphi 0, %s157
      %s159 = sphi 0, %s157
      %s160 = sphi 0, %s159
      %s174 = sphi 0, %s160
      %s178 = sphi 0, %s178
      %s180 = sphi 0, %s178
      %s181 = sphi 0, %s180
      %s195 = sphi 0, %s181
      %s199 = sphi 0, %s199
      %s201 = sphi 0, %s199
      %s202 = sphi 0, %s201
      %s216 = sphi 0, %s202
      %s220 = sphi 0, %s220
      %s222 = sphi 0, %s220
      %s223 = sphi 0, %s222
      %s237 = sphi 0, %s223
      %s241 = sphi 0, %s241
      %s243 = sphi 0, %s241
      %s244 = sphi 0, %s243
      %s258 = sphi 0, %s244
      %s262 = sphi 0, %s262
      %s264 = sphi 0, %s262
      %s265 = sphi 0, %s264
      %s279 = sphi 0, %s265
      %s285 = sphi 0, %s287
      %s288 = sphi 0, %s285
      %s289 = sphi 0, %s288
      %s305 = sphi 0, %s289
    $region4: #{tpu_custom_call.1} parent=1 // loop_header_branch
      %23 = sbr.rel (%p21) target = $region8
    $region5: #{tpu_custom_call.1} parent=1 // loop_body
      %s25 = ssub.s32 %s20, 1
      %s26 = ssub.s32 %s20, 2
      %s33 = sadd.s32 1, %s28
      %p34 = scmp.ge.s32.totalorder %s33, 3
      %s35 = scalar_select %p34, 0, %s33
      %s36 = sadd.s32 1, %s27
      %s37 = scalar_select %p34, %s36, %s27
      %p38 = scmp.ge.s32.totalorder %s37, 2
      %s39 = scalar_select %p38, 0, %s37
      %s40 = ssub.s32 %s27, %s39
      %p41 = scmp.eq.s32.totalorder %s40, 0
      %s43 = sadd.s32 %s42, 1
      %s44 = scalar_select %p41, %s42, %s43
      %p47 = pneg %p41
      %p48 = scmp.eq.s32.totalorder %s20, 5
      %p49 = por %p47, %p48
      %p50 = scmp.ne.s32.totalorder %s42, %s45
      %p51 = scmp.eq.s32.totalorder %s20, 0
      %p52 = por %p50, %p51
      %p53 = scmp.ne.s32.totalorder %s42, %s45
      %p54 = scmp.eq.s32.totalorder %s25, 5
      %p55 = por %p53, %p54
      %p56 = scmp.ne.s32.totalorder %s45, %s46
      %p57 = scmp.eq.s32.totalorder %s25, 0
      %p58 = por %p56, %p57
      %p59 = scmp.ne.s32.totalorder %s45, %s46
      %p60 = scmp.eq.s32.totalorder %s26, 5
      %p61 = por %p59, %p60
      %p63 = scmp.ne.s32.totalorder %s46, %s62
      %p64 = scmp.eq.s32.totalorder %s26, 0
      %p65 = por %p63, %p64
      %s66 = ssub.s32 %s27, %s39
      %s67 = ssub.s32 %s28, %s35
      %s68 = sor.u32 %s66, %s67
      %p69 = scmp.eq.s32.totalorder %s68, 0
      %s71 = sadd.s32 %s70, 1
      %s72 = scalar_select %p69, %s70, %s71
      %p75 = pneg %p69
      %p76 = scmp.eq.s32.totalorder %s20, 5
      %p77 = por %p75, %p76
      %p78 = scmp.ne.s32.totalorder %s70, %s73
      %p79 = scmp.eq.s32.totalorder %s20, 0
      %p80 = por %p78, %p79
      %p81 = scmp.ne.s32.totalorder %s70, %s73
      %p82 = scmp.eq.s32.totalorder %s25, 5
      %p83 = por %p81, %p82
      %p84 = scmp.ne.s32.totalorder %s73, %s74
      %p85 = scmp.eq.s32.totalorder %s25, 0
      %p86 = por %p84, %p85
      %p87 = scmp.ne.s32.totalorder %s73, %s74
      %p88 = scmp.eq.s32.totalorder %s26, 5
      %p89 = por %p87, %p88
      %p91 = scmp.ne.s32.totalorder %s74, %s90
      %p92 = scmp.eq.s32.totalorder %s26, 0
      %p93 = por %p91, %p92
      %s95 = sadd.s32 %s94, 1
      %p98 = scmp.eq.s32.totalorder %s20, 5
      %p99 = scmp.ne.s32.totalorder %s94, %s96
      %p100 = scmp.eq.s32.totalorder %s20, 0
      %p101 = por %p99, %p100
      %p102 = scmp.ne.s32.totalorder %s94, %s96
      %p103 = scmp.eq.s32.totalorder %s25, 5
      %p104 = por %p102, %p103
      %p105 = scmp.ne.s32.totalorder %s96, %s97
      %p106 = scmp.eq.s32.totalorder %s25, 0
      %p107 = por %p105, %p106
      %p108 = scmp.ne.s32.totalorder %s96, %s97
      %p109 = scmp.eq.s32.totalorder %s26, 5
      %p110 = por %p108, %p109
      %p112 = scmp.ne.s32.totalorder %s97, %s111
      %p113 = scmp.eq.s32.totalorder %s26, 0
      %p114 = por %p112, %p113
      %s116 = sadd.s32 %s115, 1
      %p119 = scmp.eq.s32.totalorder %s20, 5
      %p120 = scmp.ne.s32.totalorder %s115, %s117
      %p121 = scmp.eq.s32.totalorder %s20, 0
      %p122 = por %p120, %p121
      %p123 = scmp.ne.s32.totalorder %s115, %s117
      %p124 = scmp.eq.s32.totalorder %s25, 5
      %p125 = por %p123, %p124
      %p126 = scmp.ne.s32.totalorder %s117, %s118
      %p127 = scmp.eq.s32.totalorder %s25, 0
      %p128 = por %p126, %p127
      %p129 = scmp.ne.s32.totalorder %s117, %s118
      %p130 = scmp.eq.s32.totalorder %s26, 5
      %p131 = por %p129, %p130
      %p133 = scmp.ne.s32.totalorder %s118, %s132
      %p134 = scmp.eq.s32.totalorder %s26, 0
      %p135 = por %p133, %p134
      %s137 = sadd.s32 %s136, 1
      %p140 = scmp.eq.s32.totalorder %s20, 5
      %p141 = scmp.ne.s32.totalorder %s136, %s138
      %p142 = scmp.eq.s32.totalorder %s20, 0
      %p143 = por %p141, %p142
      %p144 = scmp.ne.s32.totalorder %s136, %s138
      %p145 = scmp.eq.s32.totalorder %s25, 5
      %p146 = por %p144, %p145
      %p147 = scmp.ne.s32.totalorder %s138, %s139
      %p148 = scmp.eq.s32.totalorder %s25, 0
      %p149 = por %p147, %p148
      %p150 = scmp.ne.s32.totalorder %s138, %s139
      %p151 = scmp.eq.s32.totalorder %s26, 5
      %p152 = por %p150, %p151
      %p154 = scmp.ne.s32.totalorder %s139, %s153
      %p155 = scmp.eq.s32.totalorder %s26, 0
      %p156 = por %p154, %p155
      %s158 = sadd.s32 %s157, 1
      %p161 = scmp.eq.s32.totalorder %s20, 5
      %p162 = scmp.ne.s32.totalorder %s157, %s159
      %p163 = scmp.eq.s32.totalorder %s20, 0
      %p164 = por %p162, %p163
      %p165 = scmp.ne.s32.totalorder %s157, %s159
      %p166 = scmp.eq.s32.totalorder %s25, 5
      %p167 = por %p165, %p166
      %p168 = scmp.ne.s32.totalorder %s159, %s160
      %p169 = scmp.eq.s32.totalorder %s25, 0
      %p170 = por %p168, %p169
      %p171 = scmp.ne.s32.totalorder %s159, %s160
      %p172 = scmp.eq.s32.totalorder %s26, 5
      %p173 = por %p171, %p172
      %p175 = scmp.ne.s32.totalorder %s160, %s174
      %p176 = scmp.eq.s32.totalorder %s26, 0
      %p177 = por %p175, %p176
      %s179 = sadd.s32 %s178, 1
      %p182 = scmp.eq.s32.totalorder %s20, 5
      %p183 = scmp.ne.s32.totalorder %s178, %s180
      %p184 = scmp.eq.s32.totalorder %s20, 0
      %p185 = por %p183, %p184
      %p186 = scmp.ne.s32.totalorder %s178, %s180
      %p187 = scmp.eq.s32.totalorder %s25, 5
      %p188 = por %p186, %p187
      %p189 = scmp.ne.s32.totalorder %s180, %s181
      %p190 = scmp.eq.s32.totalorder %s25, 0
      %p191 = por %p189, %p190
      %p192 = scmp.ne.s32.totalorder %s180, %s181
      %p193 = scmp.eq.s32.totalorder %s26, 5
      %p194 = por %p192, %p193
      %p196 = scmp.ne.s32.totalorder %s181, %s195
      %p197 = scmp.eq.s32.totalorder %s26, 0
      %p198 = por %p196, %p197
      %s200 = sadd.s32 %s199, 1
      %p203 = scmp.eq.s32.totalorder %s20, 5
      %p204 = scmp.ne.s32.totalorder %s199, %s201
      %p205 = scmp.eq.s32.totalorder %s20, 0
      %p206 = por %p204, %p205
      %p207 = scmp.ne.s32.totalorder %s199, %s201
      %p208 = scmp.eq.s32.totalorder %s25, 5
      %p209 = por %p207, %p208
      %p210 = scmp.ne.s32.totalorder %s201, %s202
      %p211 = scmp.eq.s32.totalorder %s25, 0
      %p212 = por %p210, %p211
      %p213 = scmp.ne.s32.totalorder %s201, %s202
      %p214 = scmp.eq.s32.totalorder %s26, 5
      %p215 = por %p213, %p214
      %p217 = scmp.ne.s32.totalorder %s202, %s216
      %p218 = scmp.eq.s32.totalorder %s26, 0
      %p219 = por %p217, %p218
      %s221 = sadd.s32 %s220, 1
      %p224 = scmp.eq.s32.totalorder %s20, 5
      %p225 = scmp.ne.s32.totalorder %s220, %s222
      %p226 = scmp.eq.s32.totalorder %s20, 0
      %p227 = por %p225, %p226
      %p228 = scmp.ne.s32.totalorder %s220, %s222
      %p229 = scmp.eq.s32.totalorder %s25, 5
      %p230 = por %p228, %p229
      %p231 = scmp.ne.s32.totalorder %s222, %s223
      %p232 = scmp.eq.s32.totalorder %s25, 0
      %p233 = por %p231, %p232
      %p234 = scmp.ne.s32.totalorder %s222, %s223
      %p235 = scmp.eq.s32.totalorder %s26, 5
      %p236 = por %p234, %p235
      %p238 = scmp.ne.s32.totalorder %s223, %s237
      %p239 = scmp.eq.s32.totalorder %s26, 0
      %p240 = por %p238, %p239
      %s242 = sadd.s32 %s241, 1
      %p245 = scmp.eq.s32.totalorder %s20, 5
      %p246 = scmp.ne.s32.totalorder %s241, %s243
      %p247 = scmp.eq.s32.totalorder %s20, 0
      %p248 = por %p246, %p247
      %p249 = scmp.ne.s32.totalorder %s241, %s243
      %p250 = scmp.eq.s32.totalorder %s25, 5
      %p251 = por %p249, %p250
      %p252 = scmp.ne.s32.totalorder %s243, %s244
      %p253 = scmp.eq.s32.totalorder %s25, 0
      %p254 = por %p252, %p253
      %p255 = scmp.ne.s32.totalorder %s243, %s244
      %p256 = scmp.eq.s32.totalorder %s26, 5
      %p257 = por %p255, %p256
      %p259 = scmp.ne.s32.totalorder %s244, %s258
      %p260 = scmp.eq.s32.totalorder %s26, 0
      %p261 = por %p259, %p260
      %s263 = sadd.s32 %s262, 1
      %p266 = scmp.eq.s32.totalorder %s20, 5
      %p267 = scmp.ne.s32.totalorder %s262, %s264
      %p268 = scmp.eq.s32.totalorder %s20, 0
      %p269 = por %p267, %p268
      %p270 = scmp.ne.s32.totalorder %s262, %s264
      %p271 = scmp.eq.s32.totalorder %s25, 5
      %p272 = por %p270, %p271
      %p273 = scmp.ne.s32.totalorder %s264, %s265
      %p274 = scmp.eq.s32.totalorder %s25, 0
      %p275 = por %p273, %p274
      %p276 = scmp.ne.s32.totalorder %s264, %s265
      %p277 = scmp.eq.s32.totalorder %s26, 5
      %p278 = por %p276, %p277
      %p280 = scmp.ne.s32.totalorder %s265, %s279
      %p281 = scmp.eq.s32.totalorder %s26, 0
      %p282 = por %p280, %p281
      %s283 = ssub.s32 %s27, %s39
      %p284 = scmp.eq.s32.totalorder %s283, 0
      %s286 = sadd.s32 %s285, 1
      %s287 = scalar_select %p284, %s285, %s286
      %p290 = pneg %p284
      %p291 = scmp.eq.s32.totalorder %s20, 5
      %p292 = por %p290, %p291
      %p293 = scmp.ne.s32.totalorder %s285, %s288
      %p294 = scmp.eq.s32.totalorder %s20, 0
      %p295 = por %p293, %p294
      %p296 = scmp.ne.s32.totalorder %s285, %s288
      %p297 = scmp.eq.s32.totalorder %s25, 5
      %p298 = por %p296, %p297
      %p299 = scmp.ne.s32.totalorder %s288, %s289
      %p300 = scmp.eq.s32.totalorder %s25, 0
      %p301 = por %p299, %p300
      %p302 = scmp.ne.s32.totalorder %s288, %s289
      %p303 = scmp.eq.s32.totalorder %s26, 5
      %p304 = por %p302, %p303
      %p306 = scmp.ne.s32.totalorder %s289, %s305
      %p307 = scmp.eq.s32.totalorder %s26, 0
      %p308 = por %p306, %p307
      %p309 = scmp.le.s32.totalorder 1, %s20
      %p310 = scmp.lt.s32.totalorder %s20, 7
      %p311 = pnand %p309, %p310
      %p312 = pneg %p311
      // Predicated region
      $region9: #{tpu_custom_call.1} parent=5 // pred_check
        _
      $region10: #{tpu_custom_call.1} parent=5 // pred_check_branch
        %314 = sbr.rel (%p311) target = $region12
      $region11: #{tpu_custom_call.1} parent=5 // pred_region
        %s315 = ssub.s32 %s20, 1
        // Predicated region
        $region13: #{tpu_custom_call.1} parent=11 // pred_check
          %p316 = pneg %p107
        $region14: #{tpu_custom_call.1} parent=11 // pred_check_branch
          %318 = sbr.rel (%p316) target = $region16
        $region15: #{tpu_custom_call.1} parent=11 // pred_region
          _
        $region16: #{tpu_custom_call.1} parent=11 // pred_fallthru
          _
        // Predicated region
        $region17: #{tpu_custom_call.1} parent=11 // pred_check
          %p319 = pneg %p128
        $region18: #{tpu_custom_call.1} parent=11 // pred_check_branch
          %321 = sbr.rel (%p319) target = $region20
        $region19: #{tpu_custom_call.1} parent=11 // pred_region
          _
        $region20: #{tpu_custom_call.1} parent=11 // pred_fallthru
          _
        // Predicated region
        $region21: #{tpu_custom_call.1} parent=11 // pred_check
          %p322 = pneg %p149
        $region22: #{tpu_custom_call.1} parent=11 // pred_check_branch
          %324 = sbr.rel (%p322) target = $region24
        $region23: #{tpu_custom_call.1} parent=11 // pred_region
          _
        $region24: #{tpu_custom_call.1} parent=11 // pred_fallthru
          _
        // Predicated region
        $region25: #{tpu_custom_call.1} parent=11 // pred_check
          %p325 = pneg %p170
        $region26: #{tpu_custom_call.1} parent=11 // pred_check_branch
          %327 = sbr.rel (%p325) target = $region28
        $region27: #{tpu_custom_call.1} parent=11 // pred_region
          _
        $region28: #{tpu_custom_call.1} parent=11 // pred_fallthru
          _
        // Predicated region
        $region29: #{tpu_custom_call.1} parent=11 // pred_check
          %p328 = pneg %p191
        $region30: #{tpu_custom_call.1} parent=11 // pred_check_branch
          %330 = sbr.rel (%p328) target = $region32
        $region31: #{tpu_custom_call.1} parent=11 // pred_region
          _
        $region32: #{tpu_custom_call.1} parent=11 // pred_fallthru
          _
        // Predicated region
        $region33: #{tpu_custom_call.1} parent=11 // pred_check
          %p331 = pneg %p212
        $region34: #{tpu_custom_call.1} parent=11 // pred_check_branch
          %333 = sbr.rel (%p331) target = $region36
        $region35: #{tpu_custom_call.1} parent=11 // pred_region
          _
        $region36: #{tpu_custom_call.1} parent=11 // pred_fallthru
          _
        // Predicated region
        $region37: #{tpu_custom_call.1} parent=11 // pred_check
          %p334 = pneg %p233
        $region38: #{tpu_custom_call.1} parent=11 // pred_check_branch
          %336 = sbr.rel (%p334) target = $region40
        $region39: #{tpu_custom_call.1} parent=11 // pred_region
          _
        $region40: #{tpu_custom_call.1} parent=11 // pred_fallthru
          _
        // Predicated region
        $region41: #{tpu_custom_call.1} parent=11 // pred_check
          %p337 = pneg %p254
        $region42: #{tpu_custom_call.1} parent=11 // pred_check_branch
          %339 = sbr.rel (%p337) target = $region44
        $region43: #{tpu_custom_call.1} parent=11 // pred_region
          _
        $region44: #{tpu_custom_call.1} parent=11 // pred_fallthru
          _
        // Predicated region
        $region45: #{tpu_custom_call.1} parent=11 // pred_check
          %p340 = pneg %p275
        $region46: #{tpu_custom_call.1} parent=11 // pred_check_branch
          %342 = sbr.rel (%p340) target = $region48
        $region47: #{tpu_custom_call.1} parent=11 // pred_region
          _
        $region48: #{tpu_custom_call.1} parent=11 // pred_fallthru
          _
      $region12: #{tpu_custom_call.1} parent=5 // pred_fallthru
        _
      %p343 = scmp.lt.s32.totalorder %s20, 6
      // Predicated region
      $region49: #{tpu_custom_call.1} parent=5 // pred_check
        %p344 = pneg %p343
      $region50: #{tpu_custom_call.1} parent=5 // pred_check_branch
        %346 = sbr.rel (%p344) target = $region52
      $region51: #{tpu_custom_call.1} parent=5 // pred_region
        // Predicated region
        $region53: #{tpu_custom_call.1} parent=51 // pred_check
          %p347 = pneg %p52
        $region54: #{tpu_custom_call.1} parent=51 // pred_check_branch
          %349 = sbr.rel (%p347) target = $region56
        $region55: #{tpu_custom_call.1} parent=51 // pred_region
          %p350 = scmp.lt.s32.totalorder %s27, 1
          %s351 = scalar_select %p350, %s27, 1
          %s352 = smul.addr %s351, 2
          %s353 = smul.addr %s352, 8
          %s354 = scalar_lea.vmem %s0, %s353
        $region56: #{tpu_custom_call.1} parent=51 // pred_fallthru
          _
        // Predicated region
        $region57: #{tpu_custom_call.1} parent=51 // pred_check
          %p355 = pneg %p80
        $region58: #{tpu_custom_call.1} parent=51 // pred_check_branch
          %357 = sbr.rel (%p355) target = $region60
        $region59: #{tpu_custom_call.1} parent=51 // pred_region
          %s358 = smul.u32 4, %s28
          %p359 = scmp.lt.s32.totalorder %s27, 1
          %s360 = scalar_select %p359, %s27, 1
          %p361 = scmp.lt.s32.totalorder %s358, 11
          %s362 = scalar_select %p361, %s358, 11
          %s363 = smul.addr %s360, 12
          %s364 = sadd.s32 %s362, %s363
          %s365 = smul.addr %s364, 4
          %s366 = scalar_lea.vmem %s1, %s365
          %s367 = smul.u32 4, %s28
        $region60: #{tpu_custom_call.1} parent=51 // pred_fallthru
          _
      $region52: #{tpu_custom_call.1} parent=5 // pred_fallthru
        _
      %p368 = scmp.le.s32.totalorder 1, %s20
      %p369 = scmp.lt.s32.totalorder %s20, 7
      %p370 = pnand %p368, %p369
      %p371 = pneg %p370
      // Predicated region
      $region61: #{tpu_custom_call.1} parent=5 // pred_check
        _
      $region62: #{tpu_custom_call.1} parent=5 // pred_check_branch
        %373 = sbr.rel (%p370) target = $region64
      $region63: #{tpu_custom_call.1} parent=5 // pred_region
        %s374 = ssub.s32 %s20, 1
        %p375 = scmp.lt.s32.totalorder %s29, 1
        %s376 = scalar_select %p375, %s29, 1
        %s377 = smul.addr %s376, 2
        %s378 = smul.addr %s377, 8
        %s379 = scalar_lea.vmem %s0, %s378
        %p380 = pneg %p58
        %p381 = pneg %p55
        %s382 = smul.u32 4, %s30
        %p383 = scmp.lt.s32.totalorder %s29, 1
        %s384 = scalar_select %p383, %s29, 1
        %p385 = scmp.lt.s32.totalorder %s382, 11
        %s386 = scalar_select %p385, %s382, 11
        %s387 = smul.addr %s384, 12
        %s388 = sadd.s32 %s386, %s387
        %s389 = smul.addr %s388, 4
        %s390 = scalar_lea.vmem %s1, %s389
        %p391 = pneg %p86
        %p392 = pneg %p83
        %p393 = pneg %p107
        %p394 = pneg %p104
        %p395 = pneg %p128
        %p396 = pneg %p125
        %p397 = pneg %p149
        %p398 = pneg %p146
        %p399 = pneg %p170
        %p400 = pneg %p167
        %p401 = pneg %p191
        %p402 = pneg %p188
        %p403 = pneg %p212
        %p404 = pneg %p209
        %p405 = pneg %p233
        %p406 = pneg %p230
        %p407 = pneg %p254
        %p408 = pneg %p251
        %p409 = pneg %p275
        %p410 = pneg %p272
        %p411 = pneg %p301
        %p412 = pneg %p298
        %s413 = sand.u32 %s288, 1
        %s414 = scalar_lea.sflag [#allocation7], %s413
        %s415 = sand.u32 %s288, 1
        %s416 = smul.addr %s415, 16
        %s417 = scalar_lea.vmem [#allocation6], %s416
        %p418 = scmp.lt.s32.totalorder %s29, 1
        %s419 = scalar_select %p418, %s29, 1
        %s420 = smul.addr %s419, 2
        %s421 = smul.addr %s420, 8
        %s422 = scalar_lea.vmem %s0, %s421
        %s423 = smul.u32 4, %s30
        %p424 = scmp.lt.s32.totalorder %s29, 1
        %s425 = scalar_select %p424, %s29, 1
        %p426 = scmp.lt.s32.totalorder %s423, 11
        %s427 = scalar_select %p426, %s423, 11
        %s428 = smul.addr %s425, 12
        %s429 = sadd.s32 %s427, %s428
        %s430 = smul.addr %s429, 4
        %s431 = scalar_lea.vmem %s1, %s430
        %s432 = smul.u32 4, %s30
        %p434 = scmp.eq.s32.totalorder %s30, 0
        // Predicated region
        $region65: #{tpu_custom_call.1} parent=63 // pred_check
          %p435 = pneg %p434
        $region66: #{tpu_custom_call.1} parent=63 // pred_check_branch
          %437 = sbr.rel (%p435) target = $region68
        $region67: #{tpu_custom_call.1} parent=63 // pred_region
          %v438 = vld [vmem:[%s422] sm:$0xff]
          %v439 = vld [vmem:[%s422 + $0x8] sm:$0xff]
          %v440 = vld [vmem:[%s2] sm:$0x1]
          %v441 = vld [vmem:[%s3] sm:$0x1]
          %vm442 = vcmask 261120
          %v443 = vsel %vm442, %v438, 0.0
          %444 = vadd.xlane.f32.xlu0 %v443
          %v445 = vpop.xlane.xlu0 %444
          %v446 = vsel %vm442, %v439, 0.0
          %447 = vadd.xlane.f32.xlu0 %v446
          %v448 = vpop.xlane.xlu0 %447
          %v449 = vrcp.pop 32.0
          %v450 = vmul.f32 %v445, %v449
          %v451 = vmul.f32 %v448, %v449
          %v452 = vsub.f32 %v438, %v450
          %v453 = vsub.f32 %v439, %v451
          %v454 = vmul.f32 %v452, %v452
          %v455 = vmul.f32 %v453, %v453
          %v456 = vsel %vm442, %v454, 0.0
          %457 = vadd.xlane.f32.xlu0 %v456
          %v458 = vpop.xlane.xlu0 %457
          %v459 = vsel %vm442, %v455, 0.0
          %460 = vadd.xlane.f32.xlu0 %v459
          %v461 = vpop.xlane.xlu0 %460
          %v462 = vmul.f32 %v458, %v449
          %v463 = vmul.f32 %v461, %v449
          %v464 = vadd.f32 %v462, 1e-05
          %v465 = vadd.f32 %v463, 1e-05
          %v466 = vrsqrt.pop %v464
          %v467 = vrsqrt.pop %v465
          %v468 = vmul.f32 %v452, %v466
          %v469 = vmul.f32 %v453, %v467
          %v471 = vlaneseq
          %v472 = vshrl.u32 %v471, 7
          %v473 = vsub.s32 0, %v472
          %v474 = vrot.slane %v440, %v473
          %v476 = vmul.f32 %v468, %v474
          %v477 = vmul.f32 %v469, %v474
          %v479 = vlaneseq
          %v480 = vshrl.u32 %v479, 7
          %v481 = vsub.s32 0, %v480
          %v482 = vrot.slane %v441, %v481
          %v484 = vadd.f32 %v476, %v482
          %v485 = vadd.f32 %v477, %v482
          %v486 = vpack.c.bf16 %v485, %v484
          %v487 = vld [vmem:[%s6] sm:$0xf]
          %v488 = vld [vmem:[%s6 + $0x4] sm:$0xf]
          %v489 = vld [vmem:[%s6 + $0x8] sm:$0xf]
          %v490 = vld [vmem:[%s6 + $0xc] sm:$0xf]
          %v495 = vunpack.c.l.b16 %v487
          %v496 = vunpack.c.l.b16 %v488
          %v497 = vunpack.c.l.b16 %v489
          %v498 = vunpack.c.l.b16 %v490
          %v499 = vpack.c.b16 %v496, %v495
          %v500 = vpack.c.b16 %v498, %v497
          %v504 = vsel %vm442, %v486, 0
          %506 = vmatprep.subr.bf16.mxu0 0
          %507 = vmatpush1.bf16.msra.mxu0 %v499
          %508 = vmatprep.subr.bf16.mxu0 0
          %509 = vmatpush1.bf16.msra.mxu0 %v500
          %510 = vmatprep.subr.bf16.mxu0 0
          %511 = vmatpush1.bf16.msra.mxu0 0
          %512 = vmatprep.subr.bf16.mxu0 0
          %513 = vmatpush1.bf16.msra.mxu0 0
          %514 = vmatprep.subr.bf16.mxu0 0
          %515 = vmatpush1.bf16.msra.mxu0 0
          %516 = vmatprep.subr.bf16.mxu0 0
          %517 = vmatpush1.bf16.msra.mxu0 0
          %518 = vmatprep.subr.bf16.mxu0 0
          %519 = vmatpush1.bf16.msra.mxu0 0
          %520 = vmatprep.subr.bf16.mxu0 0
          %521 = vmatpush1.bf16.msra.mxu0 0
          %522 = vmatprep.subr.bf16.mxu0 0
          %523 = vmatpush1.bf16.msra.mxu0 0
          %524 = vmatprep.subr.bf16.mxu0 0
          %525 = vmatpush1.bf16.msra.mxu0 0
          %526 = vmatprep.subr.bf16.mxu0 0
          %527 = vmatpush1.bf16.msra.mxu0 0
          %528 = vmatprep.subr.bf16.mxu0 0
          %529 = vmatpush1.bf16.msra.mxu0 0
          %530 = vmatprep.subr.bf16.mxu0 0
          %531 = vmatpush1.bf16.msra.mxu0 0
          %532 = vmatprep.subr.bf16.mxu0 0
          %533 = vmatpush1.bf16.msra.mxu0 0
          %534 = vmatprep.subr.bf16.mxu0 0
          %535 = vmatpush1.bf16.msra.mxu0 0
          %536 = vmatprep.subr.bf16.mxu0 0
          %537 = vmatpush1.bf16.msra.mxu0 0
          %538 = vmatprep.mubr.bf16.mxu0 0
          %539 = vmatmul.mubr.bf16.gmra.mrb[0].mxu0 %v504
          %v540 = vpop.f32.mrb[0].mxu0
          %v541 = vadd.f32 0.0, %v540
          %v542 = vpop.f32.mrb[0].mxu0
          %v543 = vpop.f32.mrb[0].mxu0
          %v544 = vadd.f32 0.0, %v543
          %v545 = vpop.f32.mrb[0].mxu0
          %546 = vdwg.mxu0
          %v547 = vmul.f32 %v541, 0.25
          %v548 = vmul.f32 %v544, 0.25
          %v549 = vpack.c.bf16 %v548, %v547
          %vm550 = vcmask 130048
          %551 = vst.msk [vmem:[#allocation2] sm:$0xff] %vm550, %v549
          %552 = vst [vmem:[#allocation3] sm:$0xff] -1e+30
          %553 = vst [vmem:[#allocation3 + $0x8] sm:$0xff] -1e+30
          %554 = vst [vmem:[#allocation4] sm:$0xff] 0.0
          %555 = vst [vmem:[#allocation4 + $0x8] sm:$0xff] 0.0
          %556 = vst.msk [vmem:[#allocation5] sm:$0xff] %vm550, 0.0
          %557 = vst.msk [vmem:[#allocation5 + $0x8] sm:$0xff] %vm550, 0.0
        $region68: #{tpu_custom_call.1} parent=63 // pred_fallthru
          _
        %v558 = vld [vmem:[%s431] sm:$0xf]
        %v559 = vld [vmem:[%s431 + $0x4] sm:$0xf]
        %v560 = vld [vmem:[%s431 + $0x8] sm:$0xf]
        %v561 = vld [vmem:[%s431 + $0xc] sm:$0xf]
        %v562 = vunpack.c.l.bf16 %v558
        %v563 = vunpack.c.l.bf16 %v559
        %v564 = vunpack.c.l.bf16 %v560
        %v565 = vunpack.c.l.bf16 %v561
        %v566 = vld [vmem:[%s4] sm:$0x1]
        %v567 = vld [vmem:[%s5] sm:$0x1]
        %vm568 = vcmask 113664
        %v569 = vsel %vm568, %v562, 0.0
        %570 = vadd.xlane.f32.xlu0 %v569
        %v571 = vpop.xlane.xlu0 %570
        %v572 = vsel %vm568, %v563, 0.0
        %573 = vadd.xlane.f32.xlu0 %v572
        %v574 = vpop.xlane.xlu0 %573
        %v575 = vsel %vm568, %v564, 0.0
        %576 = vadd.xlane.f32.xlu0 %v575
        %v577 = vpop.xlane.xlu0 %576
        %v578 = vsel %vm568, %v565, 0.0
        %579 = vadd.xlane.f32.xlu0 %v578
        %v580 = vpop.xlane.xlu0 %579
        %v581 = vrcp.pop 14.0
        %v582 = vmul.f32 %v571, %v581
        %v583 = vmul.f32 %v574, %v581
        %v584 = vmul.f32 %v577, %v581
        %v585 = vmul.f32 %v580, %v581
        %v586 = vsub.f32 %v562, %v582
        %v587 = vsub.f32 %v563, %v583
        %v588 = vsub.f32 %v564, %v584
        %v589 = vsub.f32 %v565, %v585
        %v590 = vmul.f32 %v586, %v586
        %v591 = vmul.f32 %v587, %v587
        %v592 = vmul.f32 %v588, %v588
        %v593 = vmul.f32 %v589, %v589
        %v594 = vsel %vm568, %v590, 0.0
        %595 = vadd.xlane.f32.xlu0 %v594
        %v596 = vpop.xlane.xlu0 %595
        %v597 = vsel %vm568, %v591, 0.0
        %598 = vadd.xlane.f32.xlu0 %v597
        %v599 = vpop.xlane.xlu0 %598
        %v600 = vsel %vm568, %v592, 0.0
        %601 = vadd.xlane.f32.xlu0 %v600
        %v602 = vpop.xlane.xlu0 %601
        %v603 = vsel %vm568, %v593, 0.0
        %604 = vadd.xlane.f32.xlu0 %v603
        %v605 = vpop.xlane.xlu0 %604
        %v606 = vmul.f32 %v596, %v581
        %v607 = vmul.f32 %v599, %v581
        %v608 = vmul.f32 %v602, %v581
        %v609 = vmul.f32 %v605, %v581
        %v610 = vadd.f32 %v606, 1e-05
        %v611 = vadd.f32 %v607, 1e-05
        %v612 = vadd.f32 %v608, 1e-05
        %v613 = vadd.f32 %v609, 1e-05
        %v614 = vrsqrt.pop %v610
        %v615 = vrsqrt.pop %v611
        %v616 = vrsqrt.pop %v612
        %v617 = vrsqrt.pop %v613
        %v618 = vmul.f32 %v586, %v614
        %v619 = vmul.f32 %v587, %v615
        %v620 = vmul.f32 %v588, %v616
        %v621 = vmul.f32 %v589, %v617
        %v623 = vlaneseq
        %v624 = vshrl.u32 %v623, 7
        %v625 = vsub.s32 0, %v624
        %v626 = vrot.slane %v566, %v625
        %v628 = vmul.f32 %v618, %v626
        %v629 = vmul.f32 %v619, %v626
        %v630 = vmul.f32 %v620, %v626
        %v631 = vmul.f32 %v621, %v626
        %v633 = vlaneseq
        %v634 = vshrl.u32 %v633, 7
        %v635 = vsub.s32 0, %v634
        %v636 = vrot.slane %v567, %v635
        %v638 = vadd.f32 %v628, %v636
        %v639 = vadd.f32 %v629, %v636
        %v640 = vadd.f32 %v630, %v636
        %v641 = vadd.f32 %v631, %v636
        %v642 = vpack.c.bf16 %v639, %v638
        %v643 = vpack.c.bf16 %v641, %v640
        %v644 = vld [vmem:[%s7] sm:$0xf]
        %v645 = vld [vmem:[%s7 + $0x4] sm:$0x7]
        %v648 = vunpack.c.l.b16 %v644
        %v649 = vunpack.c.l.b16 %v645
        %v650 = vpack.c.b16 %v649, %v648
        %v652 = vsel %vm568, %v642, 0
        %v655 = vsel %vm568, %v643, 0
        %vm657 = vcmask 1046528
        %v659 = vsel %vm657, %v650, 0
        %661 = vmatprep.subr.bf16.mxu0 0
        %662 = vmatpush1.bf16.msra.mxu0 %v659
        %663 = vmatprep.subr.bf16.mxu0 0
        %664 = vmatpush1.bf16.msra.mxu0 0
        %665 = vmatprep.subr.bf16.mxu0 0
        %666 = vmatpush1.bf16.msra.mxu0 0
        %667 = vmatprep.subr.bf16.mxu0 0
        %668 = vmatpush1.bf16.msra.mxu0 0
        %669 = vmatprep.subr.bf16.mxu0 0
        %670 = vmatpush1.bf16.msra.mxu0 0
        %671 = vmatprep.subr.bf16.mxu0 0
        %672 = vmatpush1.bf16.msra.mxu0 0
        %673 = vmatprep.subr.bf16.mxu0 0
        %674 = vmatpush1.bf16.msra.mxu0 0
        %675 = vmatprep.subr.bf16.mxu0 0
        %676 = vmatpush1.bf16.msra.mxu0 0
        %677 = vmatprep.subr.bf16.mxu0 0
        %678 = vmatpush1.bf16.msra.mxu0 0
        %679 = vmatprep.subr.bf16.mxu0 0
        %680 = vmatpush1.bf16.msra.mxu0 0
        %681 = vmatprep.subr.bf16.mxu0 0
        %682 = vmatpush1.bf16.msra.mxu0 0
        %683 = vmatprep.subr.bf16.mxu0 0
        %684 = vmatpush1.bf16.msra.mxu0 0
        %685 = vmatprep.subr.bf16.mxu0 0
        %686 = vmatpush1.bf16.msra.mxu0 0
        %687 = vmatprep.subr.bf16.mxu0 0
        %688 = vmatpush1.bf16.msra.mxu0 0
        %689 = vmatprep.subr.bf16.mxu0 0
        %690 = vmatpush1.bf16.msra.mxu0 0
        %691 = vmatprep.subr.bf16.mxu0 0
        %692 = vmatpush1.bf16.msra.mxu0 0
        %693 = vmatprep.mubr.bf16.mxu0 0
        %694 = vmatmul.mubr.bf16.gmra.mrb[0].mxu0 %v652
        %v695 = vpop.f32.mrb[0].mxu0
        %v696 = vadd.f32 0.0, %v695
        %v697 = vpop.f32.mrb[0].mxu0
        %v698 = vpop.f32.mrb[0].mxu0
        %v699 = vadd.f32 0.0, %v698
        %v700 = vpop.f32.mrb[0].mxu0
        %701 = vmatprep.mubr.bf16.mxu0 0
        %702 = vmatmul.mubr.bf16.gmra.mrb[0].mxu0 %v655
        %v703 = vpop.f32.mrb[0].mxu0
        %v704 = vadd.f32 0.0, %v703
        %v705 = vpop.f32.mrb[0].mxu0
        %v706 = vpop.f32.mrb[0].mxu0
        %v707 = vadd.f32 0.0, %v706
        %v708 = vpop.f32.mrb[0].mxu0
        %709 = vdwg.mxu0
        %v710 = vpack.c.bf16 %v699, %v696
        %v711 = vpack.c.bf16 %v707, %v704
        %v712 = vld [vmem:[%s8] sm:$0xf]
        %v713 = vld [vmem:[%s8 + $0x4] sm:$0x7]
        %v716 = vunpack.c.l.b16 %v712
        %v717 = vunpack.c.l.b16 %v713
        %v718 = vpack.c.b16 %v717, %v716
        %v720 = vsel %vm657, %v718, 0
        %722 = vmatprep.subr.bf16.mxu0 0
        %723 = vmatpush1.bf16.msra.mxu0 %v720
        %724 = vmatprep.subr.bf16.mxu0 0
        %725 = vmatpush1.bf16.msra.mxu0 0
        %726 = vmatprep.subr.bf16.mxu0 0
        %727 = vmatpush1.bf16.msra.mxu0 0
        %728 = vmatprep.subr.bf16.mxu0 0
        %729 = vmatpush1.bf16.msra.mxu0 0
        %730 = vmatprep.subr.bf16.mxu0 0
        %731 = vmatpush1.bf16.msra.mxu0 0
        %732 = vmatprep.subr.bf16.mxu0 0
        %733 = vmatpush1.bf16.msra.mxu0 0
        %734 = vmatprep.subr.bf16.mxu0 0
        %735 = vmatpush1.bf16.msra.mxu0 0
        %736 = vmatprep.subr.bf16.mxu0 0
        %737 = vmatpush1.bf16.msra.mxu0 0
        %738 = vmatprep.subr.bf16.mxu0 0
        %739 = vmatpush1.bf16.msra.mxu0 0
        %740 = vmatprep.subr.bf16.mxu0 0
        %741 = vmatpush1.bf16.msra.mxu0 0
        %742 = vmatprep.subr.bf16.mxu0 0
        %743 = vmatpush1.bf16.msra.mxu0 0
        %744 = vmatprep.subr.bf16.mxu0 0
        %745 = vmatpush1.bf16.msra.mxu0 0
        %746 = vmatprep.subr.bf16.mxu0 0
        %747 = vmatpush1.bf16.msra.mxu0 0
        %748 = vmatprep.subr.bf16.mxu0 0
        %749 = vmatpush1.bf16.msra.mxu0 0
        %750 = vmatprep.subr.bf16.mxu0 0
        %751 = vmatpush1.bf16.msra.mxu0 0
        %752 = vmatprep.subr.bf16.mxu0 0
        %753 = vmatpush1.bf16.msra.mxu0 0
        %754 = vmatprep.mubr.bf16.mxu0 0
        %755 = vmatmul.mubr.bf16.gmra.mrb[0].mxu0 %v652
        %v756 = vpop.f32.mrb[0].mxu0
        %v757 = vadd.f32 0.0, %v756
        %v758 = vpop.f32.mrb[0].mxu0
        %v759 = vpop.f32.mrb[0].mxu0
        %v760 = vadd.f32 0.0, %v759
        %v761 = vpop.f32.mrb[0].mxu0
        %762 = vmatprep.mubr.bf16.mxu0 0
        %763 = vmatmul.mubr.bf16.gmra.mrb[0].mxu0 %v655
        %v764 = vpop.f32.mrb[0].mxu0
        %v765 = vadd.f32 0.0, %v764
        %v766 = vpop.f32.mrb[0].mxu0
        %v767 = vpop.f32.mrb[0].mxu0
        %v768 = vadd.f32 0.0, %v767
        %v769 = vpop.f32.mrb[0].mxu0
        %770 = vdwg.mxu0
        %v771 = vpack.c.bf16 %v760, %v757
        %v772 = vpack.c.bf16 %v768, %v765
        %s773 = smul.u32 %s30, 32
        %v774 = vlaneseq
        %v775 = vand.u32 %v774, 127
        %v776 = vstv %s773
        %v777 = vadd.s32 %v776, %v775
        %vm778 = vcmp.lt.s32.totalorder %v777, 80
        %v779 = vsel %vm778, 0.0, -1e+30
        %v780 = vld [vmem:[#allocation2] sm:$0xff]
        %vm781 = vcmask 130048
        %v783 = vsel %vm781, %v780, 0
        %v786 = vsel %vm781, %v710, 0
        %v789 = vsel %vm781, %v711, 0
        %791 = vmatprep.subr.bf16.mxu0 0
        %792 = vmatpush1.bf16.xpose.msra.mxu0 %v786
        %793 = vmatprep.subr.bf16.mxu0 0
        %794 = vmatpush1.bf16.xpose.msra.mxu0 %v789
        %795 = vmatprep.subr.bf16.mxu0 0
        %796 = vmatpush1.bf16.xpose.msra.mxu0 0
        %797 = vmatprep.subr.bf16.mxu0 0
        %798 = vmatpush1.bf16.xpose.msra.mxu0 0
        %799 = vmatprep.subr.bf16.mxu0 0
        %800 = vmatpush1.bf16.xpose.msra.mxu0 0
        %801 = vmatprep.subr.bf16.mxu0 0
        %802 = vmatpush1.bf16.xpose.msra.mxu0 0
        %803 = vmatprep.subr.bf16.mxu0 0
        %804 = vmatpush1.bf16.xpose.msra.mxu0 0
        %805 = vmatprep.subr.bf16.mxu0 0
        %806 = vmatpush1.bf16.xpose.msra.mxu0 0
        %807 = vmatprep.subr.bf16.mxu0 0
        %808 = vmatpush1.bf16.xpose.msra.mxu0 0
        %809 = vmatprep.subr.bf16.mxu0 0
        %810 = vmatpush1.bf16.xpose.msra.mxu0 0
        %811 = vmatprep.subr.bf16.mxu0 0
        %812 = vmatpush1.bf16.xpose.msra.mxu0 0
        %813 = vmatprep.subr.bf16.mxu0 0
        %814 = vmatpush1.bf16.xpose.msra.mxu0 0
        %815 = vmatprep.subr.bf16.mxu0 0
        %816 = vmatpush1.bf16.xpose.msra.mxu0 0
        %817 = vmatprep.subr.bf16.mxu0 0
        %818 = vmatpush1.bf16.xpose.msra.mxu0 0
        %819 = vmatprep.subr.bf16.mxu0 0
        %820 = vmatpush1.bf16.xpose.msra.mxu0 0
        %821 = vmatprep.subr.bf16.mxu0 0
        %822 = vmatpush1.bf16.xpose.msra.mxu0 0
        %823 = vmatprep.mubr.bf16.mxu0 0
        %824 = vmatmul.mubr.bf16.gmra.mrb[0].mxu0 %v783
        %v825 = vpop.f32.mrb[0].mxu0
        %v826 = vadd.f32 %v779, %v825
        %v827 = vpop.f32.mrb[0].mxu0
        %v828 = vpop.f32.mrb[0].mxu0
        %v829 = vadd.f32 %v779, %v828
        %v830 = vpop.f32.mrb[0].mxu0
        %831 = vdwg.mxu0
        %v832 = vld [vmem:[#allocation3] sm:$0xff]
        %v833 = vld [vmem:[#allocation3 + $0x8] sm:$0xff]
        %vm834 = vcmask 261120
        %v835 = vsel %vm834, %v826, -inf
        %836 = vmax.xlane.f32.xlu0 %v835
        %v837 = vpop.xlane.xlu0 %836
        %v838 = vsel %vm834, %v829, -inf
        %839 = vmax.xlane.f32.xlu0 %v838
        %v840 = vpop.xlane.xlu0 %839
        %v841 = vmax.f32 %v832, %v837
        %v842 = vmax.f32 %v833, %v840
        %v843 = vsub.f32 %v832, %v841
        %v844 = vsub.f32 %v833, %v842
        %v845 = vmul.f32 %v843, 1.442695
        %v846 = vpow.pop %v845
        %v847 = vmul.f32 %v844, 1.442695
        %v848 = vpow.pop %v847
        %850 = vset.pattern.permute.xlu0 0
        %851 = vperm.xlu0 %850, %v841
        %v852 = vpop.permute.xlu0 %851
        %855 = vset.pattern.permute.xlu0 0
        %856 = vperm.xlu0 %855, %v842
        %v857 = vpop.permute.xlu0 %856
        %v859 = vsub.f32 %v826, %v852
        %v860 = vsub.f32 %v829, %v857
        %v861 = vmul.f32 %v859, 1.442695
        %v862 = vpow.pop %v861
        %v863 = vmul.f32 %v860, 1.442695
        %v864 = vpow.pop %v863
        %v865 = vld [vmem:[#allocation4] sm:$0xff]
        %v866 = vld [vmem:[#allocation4 + $0x8] sm:$0xff]
        %v867 = vmul.f32 %v846, %v865
        %v868 = vmul.f32 %v848, %v866
        %v869 = vsel %vm834, %v862, 0.0
        %870 = vadd.xlane.f32.xlu0 %v869
        %v871 = vpop.xlane.xlu0 %870
        %v872 = vsel %vm834, %v864, 0.0
        %873 = vadd.xlane.f32.xlu0 %v872
        %v874 = vpop.xlane.xlu0 %873
        %v875 = vadd.f32 %v867, %v871
        %v876 = vadd.f32 %v868, %v874
        %877 = vst [vmem:[#allocation4] sm:$0xff] %v875
        %878 = vst [vmem:[#allocation4 + $0x8] sm:$0xff] %v876
        %v879 = vld [vmem:[#allocation5] sm:$0xff]
        %v880 = vld [vmem:[#allocation5 + $0x8] sm:$0xff]
        %882 = vset.pattern.permute.xlu0 0
        %883 = vperm.xlu0 %882, %v846
        %v884 = vpop.permute.xlu0 %883
        %887 = vset.pattern.permute.xlu0 0
        %888 = vperm.xlu0 %887, %v848
        %v889 = vpop.permute.xlu0 %888
        %v891 = vmul.f32 %v884, %v879
        %v892 = vmul.f32 %v889, %v880
        %v893 = vpack.c.bf16 %v864, %v862
        %v895 = vsel %vm834, %v893, 0
        %897 = vmatprep.subr.bf16.mxu0 0
        %898 = vmatpush1.bf16.msra.mxu0 %v771
        %899 = vmatprep.subr.bf16.mxu0 0
        %900 = vmatpush1.bf16.msra.mxu0 %v772
        %901 = vmatprep.subr.bf16.mxu0 0
        %902 = vmatpush1.bf16.msra.mxu0 0
        %903 = vmatprep.subr.bf16.mxu0 0
        %904 = vmatpush1.bf16.msra.mxu0 0
        %905 = vmatprep.subr.bf16.mxu0 0
        %906 = vmatpush1.bf16.msra.mxu0 0
        %907 = vmatprep.subr.bf16.mxu0 0
        %908 = vmatpush1.bf16.msra.mxu0 0
        %909 = vmatprep.subr.bf16.mxu0 0
        %910 = vmatpush1.bf16.msra.mxu0 0
        %911 = vmatprep.subr.bf16.mxu0 0
        %912 = vmatpush1.bf16.msra.mxu0 0
        %913 = vmatprep.subr.bf16.mxu0 0
        %914 = vmatpush1.bf16.msra.mxu0 0
        %915 = vmatprep.subr.bf16.mxu0 0
        %916 = vmatpush1.bf16.msra.mxu0 0
        %917 = vmatprep.subr.bf16.mxu0 0
        %918 = vmatpush1.bf16.msra.mxu0 0
        %919 = vmatprep.subr.bf16.mxu0 0
        %920 = vmatpush1.bf16.msra.mxu0 0
        %921 = vmatprep.subr.bf16.mxu0 0
        %922 = vmatpush1.bf16.msra.mxu0 0
        %923 = vmatprep.subr.bf16.mxu0 0
        %924 = vmatpush1.bf16.msra.mxu0 0
        %925 = vmatprep.subr.bf16.mxu0 0
        %926 = vmatpush1.bf16.msra.mxu0 0
        %927 = vmatprep.subr.bf16.mxu0 0
        %928 = vmatpush1.bf16.msra.mxu0 0
        %929 = vmatprep.mubr.bf16.mxu0 0
        %930 = vmatmul.mubr.bf16.gmra.mrb[0].mxu0 %v895
        %v931 = vpop.f32.mrb[0].mxu0
        %v932 = vadd.f32 0.0, %v931
        %v933 = vpop.f32.mrb[0].mxu0
        %v934 = vpop.f32.mrb[0].mxu0
        %v935 = vadd.f32 0.0, %v934
        %v936 = vpop.f32.mrb[0].mxu0
        %937 = vdwg.mxu0
        %v938 = vadd.f32 %v891, %v932
        %v939 = vadd.f32 %v892, %v935
        %940 = vst.msk [vmem:[#allocation5] sm:$0xff] %vm781, %v938
        %941 = vst.msk [vmem:[#allocation5 + $0x8] sm:$0xff] %vm781, %v939
        %942 = vst [vmem:[#allocation3] sm:$0xff] %v841
        %943 = vst [vmem:[#allocation3 + $0x8] sm:$0xff] %v842
        %p944 = scmp.eq.s32.totalorder %s30, 2
        // Predicated region
        $region69: #{tpu_custom_call.1} parent=63 // pred_check
          %p945 = pneg %p944
        $region70: #{tpu_custom_call.1} parent=63 // pred_check_branch
          %947 = sbr.rel (%p945) target = $region72
        $region71: #{tpu_custom_call.1} parent=63 // pred_region
          %v948 = vld [vmem:[#allocation4] sm:$0xff]
          %v949 = vld [vmem:[#allocation4 + $0x8] sm:$0xff]
          %v950 = vrcp.pop %v948
          %v951 = vrcp.pop %v949
          %953 = vset.pattern.permute.xlu0 0
          %954 = vperm.xlu0 %953, %v950
          %v955 = vpop.permute.xlu0 %954
          %958 = vset.pattern.permute.xlu0 0
          %959 = vperm.xlu0 %958, %v951
          %v960 = vpop.permute.xlu0 %959
          %v962 = vld [vmem:[#allocation5] sm:$0xff]
          %v963 = vld [vmem:[#allocation5 + $0x8] sm:$0xff]
          %v964 = vmul.f32 %v962, %v955
          %v965 = vmul.f32 %v963, %v960
          %v966 = vpack.c.bf16 %v965, %v964
          %v967 = vld [vmem:[%s422] sm:$0xff]
          %v968 = vld [vmem:[%s422 + $0x8] sm:$0xff]
          %v969 = vld [vmem:[%s10] sm:$0x1]
          %v971 = vlaneseq
          %v972 = vshrl.u32 %v971, 7
          %v973 = vsub.s32 0, %v972
          %v974 = vrot.slane %v969, %v973
          %v976 = vadd.f32 %v967, %v974
          %v977 = vadd.f32 %v968, %v974
          %v978 = vld [vmem:[%s9] sm:$0xf]
          %v979 = vld [vmem:[%s9 + $0x4] sm:$0xf]
          %v982 = vunpack.c.l.b16 %v978
          %v983 = vunpack.c.l.b16 %v979
          %v984 = vpack.c.b16 %v983, %v982
          %v987 = vsel %vm781, %v966, 0
          %989 = vmatprep.subr.bf16.mxu0 0
          %990 = vmatpush1.bf16.msra.mxu0 %v984
          %991 = vmatprep.subr.bf16.mxu0 0
          %992 = vmatpush1.bf16.msra.mxu0 0
          %993 = vmatprep.subr.bf16.mxu0 0
          %994 = vmatpush1.bf16.msra.mxu0 0
          %995 = vmatprep.subr.bf16.mxu0 0
          %996 = vmatpush1.bf16.msra.mxu0 0
          %997 = vmatprep.subr.bf16.mxu0 0
          %998 = vmatpush1.bf16.msra.mxu0 0
          %999 = vmatprep.subr.bf16.mxu0 0
          %1000 = vmatpush1.bf16.msra.mxu0 0
          %1001 = vmatprep.subr.bf16.mxu0 0
          %1002 = vmatpush1.bf16.msra.mxu0 0
          %1003 = vmatprep.subr.bf16.mxu0 0
          %1004 = vmatpush1.bf16.msra.mxu0 0
          %1005 = vmatprep.subr.bf16.mxu0 0
          %1006 = vmatpush1.bf16.msra.mxu0 0
          %1007 = vmatprep.subr.bf16.mxu0 0
          %1008 = vmatpush1.bf16.msra.mxu0 0
          %1009 = vmatprep.subr.bf16.mxu0 0
          %1010 = vmatpush1.bf16.msra.mxu0 0
          %1011 = vmatprep.subr.bf16.mxu0 0
          %1012 = vmatpush1.bf16.msra.mxu0 0
          %1013 = vmatprep.subr.bf16.mxu0 0
          %1014 = vmatpush1.bf16.msra.mxu0 0
          %1015 = vmatprep.subr.bf16.mxu0 0
          %1016 = vmatpush1.bf16.msra.mxu0 0
          %1017 = vmatprep.subr.bf16.mxu0 0
          %1018 = vmatpush1.bf16.msra.mxu0 0
          %1019 = vmatprep.subr.bf16.mxu0 0
          %1020 = vmatpush1.bf16.msra.mxu0 0
          %1021 = vmatprep.mubr.bf16.mxu0 0
          %1022 = vmatmul.mubr.bf16.gmra.mrb[0].mxu0 %v987
          %v1023 = vpop.f32.mrb[0].mxu0
          %v1024 = vadd.f32 0.0, %v1023
          %v1025 = vpop.f32.mrb[0].mxu0
          %v1026 = vpop.f32.mrb[0].mxu0
          %v1027 = vadd.f32 0.0, %v1026
          %v1028 = vpop.f32.mrb[0].mxu0
          %1029 = vdwg.mxu0
          %v1030 = vadd.f32 %v976, %v1024
          %v1031 = vadd.f32 %v977, %v1027
          %1032 = vst.msk [vmem:[%s417] sm:$0xff] %vm834, %v1030
          %1033 = vst.msk [vmem:[%s417 + $0x8] sm:$0xff] %vm834, %v1031
        $region72: #{tpu_custom_call.1} parent=63 // pred_fallthru
          _
        %s1034 = sand.u32 %s288, 1
        %s1035 = scalar_lea.sflag [#allocation7], %s1034
        %s1036 = sand.u32 %s288, 1
        %s1037 = smul.addr %s1036, 16
        %s1038 = scalar_lea.vmem [#allocation6], %s1037
        // Predicated region
        $region73: #{tpu_custom_call.1} parent=63 // pred_check
          %p1039 = pneg %p298
        $region74: #{tpu_custom_call.1} parent=63 // pred_check_branch
          %1041 = sbr.rel (%p1039) target = $region76
        $region75: #{tpu_custom_call.1} parent=63 // pred_region
          %s1043 = ssub.s32 256, 256
          %1044 = vsyncadd %s1035, %s1043
          %s1045 = smul.addr %s29, 2
          %s1046 = smul.addr %s1045, 128
          %s1047 = scalar_lea.hbm %s11, %s1046
          %s1048 = sshll.u32 %s1038, 4
          %s1049 = int_to_ptr.vmem [resolvable:$true] %s1048
          %1054 = dma.vmem_to_hbm [thread:$0]  %s1049, 256, %s1047, %s1035, 128, 128, 8
        $region76: #{tpu_custom_call.1} parent=63 // pred_fallthru
          _
      $region64: #{tpu_custom_call.1} parent=5 // pred_fallthru
        _
      %p1055 = scmp.le.s32.totalorder 2, %s20
      // Predicated region
      $region77: #{tpu_custom_call.1} parent=5 // pred_check
        %p1056 = pneg %p1055
      $region78: #{tpu_custom_call.1} parent=5 // pred_check_branch
        %1058 = sbr.rel (%p1056) target = $region80
      $region79: #{tpu_custom_call.1} parent=5 // pred_region
        %s1059 = ssub.s32 %s20, 2
        // Predicated region
        $region81: #{tpu_custom_call.1} parent=79 // pred_check
          %p1060 = pneg %p304
        $region82: #{tpu_custom_call.1} parent=79 // pred_check_branch
          %1062 = sbr.rel (%p1060) target = $region84
        $region83: #{tpu_custom_call.1} parent=79 // pred_region
          %s1063 = sand.u32 %s289, 1
          %s1064 = scalar_lea.sflag [#allocation7], %s1063
          %s1065 = sand.u32 %s289, 1
          %s1066 = smul.addr %s1065, 16
          %s1067 = scalar_lea.vmem [#allocation6], %s1066
          %1068 = dma.done %s1064, 256
        $region84: #{tpu_custom_call.1} parent=79 // pred_fallthru
          _
      $region80: #{tpu_custom_call.1} parent=5 // pred_fallthru
        _
    $region6: #{tpu_custom_call.1} parent=1 // loop_footer
      %s24 = sadd.s32 1, %s20
    $region7: #{tpu_custom_call.1} parent=1 // loop_footer_branch
      %19 = sbr.rel target = $region3
    $region8: #{tpu_custom_call.1} parent=1 // loop_exit
      _
    %1069 = vsyncpa [#allocation7], 1
    %s1070 = scalar_lea.sflag [#allocation7], 1
    %1071 = vsyncpa %s1070, 1

</llo_original>
